<compile_context>
chip_gen: v5e
topology: v5e:2x2
jax: 0.10.0
libtpu: 0.0.40
codegen_flags: <defaults>
</compile_context>

<pallas_src>
import jax
import jax.numpy as jnp
from jax import lax
from jax.experimental import pallas as pl
from jax.experimental.pallas import tpu as pltpu


_TDOT = (((0,), (0,)), ((), ()))  # contract lhs dim0 with rhs dim0  ==  A.T @ B


def subset_ranking_kernel(adj_ref, uni_ref, sub_ref,
                          wsub0_ref, ws3be_ref, w2_ref, bias_ref,
                          q_ref):
    f32 = jnp.float32
    bk = adj_ref.shape[0]
    n_sub = adj_ref.shape[2]
    nu = uni_ref.shape[2]          # n_uni_feat
    n_hid = w2_ref.shape[1]

    def dot(a, b):
        return jnp.dot(a, b, preferred_element_type=f32)

    def tdot(a, b):                # a.T @ b without materializing the transpose
        return lax.dot_general(a, b, dimension_numbers=_TDOT,
                               preferred_element_type=f32)

    # Weights are shared by every instance in this block: load once.
    wsub0 = wsub0_ref[...]         # (n_sub_feat, 3*n_hid) = [w1a | Wu3@w1c | Wu3@w1d]
    ws3be = ws3be_ref[...]         # (n_uni_feat, 2*n_hid) = [Ws3@w1b | Ws3@w1e]
    w2 = w2_ref[...]               # (n_hid, n_hid)
    b1 = bias_ref[0:1, :]          # (1, n_hid)
    b2 = bias_ref[1:2, :]          # (1, n_hid)
    w3t = bias_ref[2:3, :]         # (1, n_hid) == w3.T

    rows = []
    for i in range(bk):            # small static unroll over the Bk instances
        adj = adj_ref[i].astype(f32)                    # (n_uni, n_sub)
        uni0 = uni_ref[i].astype(f32)                   # (n_uni, n_uni_feat)
        sub0 = sub_ref[i].astype(f32)                   # (n_sub, n_sub_feat)

        # ---- BGCN.normalize: D^{-1} A, exact reciprocal (zero degree -> inf,
        # same semantics as the PyTorch reference).
        inv_row = pl.reciprocal(jnp.sum(adj, axis=1, keepdims=True), approx=False)
        inv_col = pl.reciprocal(jnp.sum(adj, axis=0, keepdims=True), approx=False)
        adj_r = adj * inv_row      # normalize(adj)               (n_uni, n_sub)
        adj_c = adj * inv_col      # adj_c.T == normalize(adj.T)  (n_uni, n_sub)
        mask = (adj > 0).astype(f32)                    # ORIGINAL adjacency

        # ---- depth-1 MXU passes (all independent)
        sc = tdot(adj_c, jnp.concatenate([adj_r, uni0], axis=1))  # (n_sub, n_sub+nu)
        m1 = tdot(mask, adj_r)                                    # mask^T @ adj_n
        t0 = dot(sub0, wsub0)                                     # (n_sub, 3*n_hid)

        s_mat = sc[:, :n_sub]            # S  = adjT_n @ adj_n
        c1 = sc[:, n_sub:]               # C1 = adjT_n @ uni0
        h1a = t0[:, :n_hid]              # sub0 @ w1a
        t1cd = t0[:, n_hid:]             # [sub0@Wu3c | sub0@Wu3d]

        # ---- depth-2: one wide pass  S @ [C1 | T1c | T1d]
        ct = dot(s_mat, jnp.concatenate([c1, t1cd], axis=1))      # (n_sub, nu+2*n_hid)
        c2 = ct[:, :nu]                  # S @ C1
        t2c = ct[:, nu:nu + n_hid]
        t2d = ct[:, nu + n_hid:]

        # ---- depth-3 (independent)
        be = dot(c2, ws3be)                               # [sub_f@w1b | sub_f@w1e]
        h1c = dot(m1, t2c)                                # neighbor @ w1c
        r_adj = jnp.sum(adj_r, axis=0, keepdims=True)     # (1, n_sub)
        usum = dot(r_adj, t2d)                            # uni_sum @ w1d   (1, n_hid)

        h1b = be[:, :n_hid]
        ssum = jnp.sum(be[:, n_hid:], axis=0, keepdims=True)      # sub_sum @ w1e

        # ---- Q_function MLP: Linear -> ReLU -> Linear -> ReLU -> Linear
        # TODO(synk): nn.Dropout(0.3) implemented as identity (inference mode).
        h1 = jnp.maximum(h1a + h1b + h1c + usum + ssum + b1, 0.0)
        h2 = jnp.maximum(dot(h1, w2) + b2, 0.0)           # depth-4 MXU pass
        rows.append(jnp.sum(h2 * w3t, axis=-1))           # final (64->1) on VPU+XLU

    q_ref[0] = jnp.stack(rows, axis=0).astype(q_ref.dtype)        # (bk, n_sub)


def subset_ranking(adj, uni_feat, sub_feat, params, *, block_b=None):
    """Forward of SubsetRanking.

    Accepts a single instance (2-D adj/uni_feat/sub_feat) or a batch with a
    leading batch dim.  Bk instances are processed per grid step; the grid is
    kept >= 2 when possible so both v7x TensorCores are fed.
    """
    single = (adj.ndim == 2)
    if single:
        adj, uni_feat, sub_feat = adj[None], uni_feat[None], sub_feat[None]
    B, n_uni, n_sub = adj.shape
    nu = uni_feat.shape[-1]
    ns = sub_feat.shape[-1]
    n_hid = params["w2"].shape[0]

    # ---- hoist every weight-only product out of the kernel -----------------
    ws1, wu1, w1 = params["ws1"], params["wu1"], params["w1"]
    w1a = w1[0:ns]
    w1b = w1[ns:2 * ns]
    w1c = w1[2 * ns:2 * ns + nu]
    w1d = w1[2 * ns + nu:2 * ns + 2 * nu]
    w1e = w1[2 * ns + 2 * nu:]
    ws3 = ws1 @ wu1 @ ws1                                   # (nu, ns)
    wu3 = wu1 @ ws1 @ wu1                                   # (ns, nu)
    wsub0 = jnp.concatenate([w1a, wu3 @ w1c, wu3 @ w1d], axis=1)   # (ns, 3*n_hid)
    ws3be = jnp.concatenate([ws3 @ w1b, ws3 @ w1e], axis=1)        # (nu, 2*n_hid)
    bias_pack = jnp.concatenate([params["b1"].reshape(1, n_hid),
                                 params["b2"].reshape(1, n_hid),
                                 params["w3"].reshape(1, n_hid)], axis=0)

    # ---- batch Bk instances per grid step ----------------------------------
    if block_b is None:
        block_b = max(1, min(4, pl.cdiv(B, 2)))
    bk = int(block_b)
    n_blocks = pl.cdiv(B, bk)
    b_pad = n_blocks * bk
    if b_pad != B:
        pad = b_pad - B
        adj = jnp.concatenate(
            [adj, jnp.ones((pad, n_uni, n_sub), adj.dtype)], axis=0)
        uni_feat = jnp.concatenate(
            [uni_feat, jnp.zeros((pad, n_uni, nu), uni_feat.dtype)], axis=0)
        sub_feat = jnp.concatenate(
            [sub_feat, jnp.zeros((pad, n_sub, ns), sub_feat.dtype)], axis=0)

    vmem = pl.BlockSpec(memory_space=pltpu.MemorySpace.VMEM)
    out = pl.pallas_call(
        subset_ranking_kernel,
        out_shape=jax.ShapeDtypeStruct((n_blocks, bk, n_sub), jnp.float32),
        grid=(n_blocks,),
        in_specs=[pl.BlockSpec((bk, n_uni, n_sub), lambda b: (b, 0, 0)),
                  pl.BlockSpec((bk, n_uni, nu), lambda b: (b, 0, 0)),
                  pl.BlockSpec((bk, n_sub, ns), lambda b: (b, 0, 0)),
                  vmem, vmem, vmem, vmem],
        out_specs=pl.BlockSpec((1, bk, n_sub), lambda b: (b, 0, 0)),
        compiler_params=pltpu.CompilerParams(
            dimension_semantics=("parallel",)),
    )(adj, uni_feat, sub_feat, wsub0, ws3be, params["w2"], bias_pack)

    # Final bias b3 folded in here (cheaper than another ref); restore the
    # module's (n_sub, 1) column output layout.
    q = out.reshape(b_pad, n_sub)[:B] + params["b3"].reshape(1, 1)
    q = q[..., None]
    return q[0] if single else q


def _subset_ranking_ref(adj, uni0, sub0, p):
    """Pure-JAX reference following the original (un-reassociated) PyTorch order."""
    adj_n = adj / jnp.sum(adj, axis=1, keepdims=True)
    adjT_n = adj.T / jnp.sum(adj, axis=0, keepdims=True).T
    s1 = lambda a, x: a @ x @ p["ws1"]
    u1 = lambda a, x: a @ x @ p["wu1"]
    sub_a = s1(adjT_n, uni0); uni_a = u1(adj_n, sub0)
    sub_b = s1(adjT_n, uni_a); uni_b = u1(adj_n, sub_a)
    sub_f = s1(adjT_n, uni_b); uni_f = u1(adj_n, sub_b)
    mask = (adj > 0).astype(jnp.float32)
    n_sub = sub0.shape[0]
    feat = jnp.concatenate([
        sub0, sub_f, mask.T @ uni_f,
        jnp.broadcast_to(jnp.sum(uni_f, axis=0, keepdims=True), (n_sub, uni0.shape[1])),
        jnp.broadcast_to(jnp.sum(sub_f, axis=0, keepdims=True), (n_sub, sub0.shape[1])),
    ], axis=1)
    h1 = jnp.maximum(feat @ p["w1"] + p["b1"], 0.0)
    h2 = jnp.maximum(h1 @ p["w2"] + p["b2"], 0.0)
    return h2 @ p["w3"] + p["b3"]


if __name__ == "__main__":
    key = jax.random.PRNGKey(0)
    B = 8
    n_uni, n_sub = 16, 8
    n_uni_feat, n_sub_feat, n_hid = 32, 32, 64
    n_feat = 2 * n_uni_feat + 3 * n_sub_feat              # 160

    ks = jax.random.split(key, 10)

    # Binary bipartite adjacency; guarantee every row & column of every
    # instance has a nonzero entry so D^{-1} normalization is finite.
    adj = (jax.random.uniform(ks[0], (B, n_uni, n_sub)) > 0.5).astype(jnp.float32)
    diag = jnp.zeros((n_uni, n_sub), jnp.float32).at[
        jnp.arange(n_uni), jnp.arange(n_uni) % n_sub].set(1.0)
    adj = jnp.maximum(adj, diag[None])

    uni_feat = jax.random.normal(ks[1], (B, n_uni, n_uni_feat), jnp.float32)
    sub_feat = jax.random.normal(ks[2], (B, n_sub, n_sub_feat), jnp.float32)

    def xavier_normal(k, shape):
        std = (2.0 / (shape[0] + shape[1])) ** 0.5
        return std * jax.random.normal(k, shape, jnp.float32)

    params = {
        # GraphConvLayer weights (xavier_normal_, as in __init__)
        "ws1": xavier_normal(ks[3], (n_uni_feat, n_sub_feat)),
        "wu1": xavier_normal(ks[4], (n_sub_feat, n_uni_feat)),
        # Q_function Linear layers (stored (in, out); synthetic deterministic init)
        "w1": xavier_normal(ks[5], (n_feat, n_hid)),
        "b1": 0.01 * jax.random.normal(ks[6], (1, n_hid), jnp.float32),
        "w2": xavier_normal(ks[7], (n_hid, n_hid)),
        "b2": 0.01 * jax.random.normal(ks[8], (1, n_hid), jnp.float32),
        "w3": xavier_normal(ks[9], (n_hid, 1)),
        "b3": jnp.zeros((1, 1), jnp.float32),
    }

    q_batched = subset_ranking(adj, uni_feat, sub_feat, params)          # (B, n_sub, 1)
    q_single = subset_ranking(adj[0], uni_feat[0], sub_feat[0], params)  # (n_sub, 1)
    jax.block_until_ready((q_batched, q_single))

    assert q_batched.shape == (B, n_sub, 1) and q_batched.dtype == jnp.float32
    assert q_single.shape == (n_sub, 1) and q_single.dtype == jnp.float32

    # Correctness vs. pure-JAX reference (exact reciprocal -> tight tolerance;
    # only difference is float reassociation of the matmul chains).
    q_ref = jnp.stack([_subset_ranking_ref(adj[b], uni_feat[b], sub_feat[b], params)
                       for b in range(B)])
    err = float(jnp.max(jnp.abs(q_batched - q_ref)))
    assert jnp.allclose(q_batched, q_ref, rtol=1e-3, atol=1e-3), err
    assert jnp.allclose(q_single, q_batched[0], rtol=1e-5, atol=1e-5)

    print("KERNEL_OK")
</pallas_src>

<mosaic_0001>
module attributes {stable_mosaic.version = 11 : i64} {
  func.func @subset_ranking_kernel(%arg0: i32, %arg1: memref<4x16x8xf32, #tpu.memory_space<vmem>>, %arg2: memref<4x16x32xf32, #tpu.memory_space<vmem>>, %arg3: memref<4x8x32xf32, #tpu.memory_space<vmem>>, %arg4: memref<32x192xf32, #tpu.memory_space<vmem>>, %arg5: memref<32x128xf32, #tpu.memory_space<vmem>>, %arg6: memref<64x64xf32, #tpu.memory_space<vmem>>, %arg7: memref<3x64xf32, #tpu.memory_space<vmem>>, %arg8: memref<1x4x8xf32, #tpu.memory_space<vmem>>) attributes {dimension_semantics = [#tpu.dimension_semantics<parallel>], iteration_bounds = array<i64: 2>, scalar_prefetch = 0 : i64, scratch_operands = 0 : i64, tpu.core_type = #tpu.core_type<tc>, window_params = [{transform_indices = @transform_0, window_bounds = array<i64: 4, 16, 8>}, {transform_indices = @transform_1, window_bounds = array<i64: 4, 16, 32>}, {transform_indices = @transform_2, window_bounds = array<i64: 4, 8, 32>}, {pipeline_mode = #tpu.pipeline_mode<synchronous>, transform_indices = @transform_3, window_bounds = array<i64: 32, 192>}, {pipeline_mode = #tpu.pipeline_mode<synchronous>, transform_indices = @transform_4, window_bounds = array<i64: 32, 128>}, {pipeline_mode = #tpu.pipeline_mode<synchronous>, transform_indices = @transform_5, window_bounds = array<i64: 64, 64>}, {pipeline_mode = #tpu.pipeline_mode<synchronous>, transform_indices = @transform_6, window_bounds = array<i64: 3, 64>}, {transform_indices = @transform_7, window_bounds = array<i64: 1, 4, 8>}]} {
    %c0 = arith.constant 0 : index
    %c0_0 = arith.constant 0 : index
    %0 = vector.load %arg4[%c0, %c0_0] : memref<32x192xf32, #tpu.memory_space<vmem>>, vector<32x192xf32>
    %c0_1 = arith.constant 0 : index
    %c0_2 = arith.constant 0 : index
    %1 = vector.load %arg5[%c0_1, %c0_2] : memref<32x128xf32, #tpu.memory_space<vmem>>, vector<32x128xf32>
    %c0_3 = arith.constant 0 : index
    %c0_4 = arith.constant 0 : index
    %2 = vector.load %arg6[%c0_3, %c0_4] : memref<64x64xf32, #tpu.memory_space<vmem>>, vector<64x64xf32>
    %c0_5 = arith.constant 0 : index
    %c0_6 = arith.constant 0 : index
    %3 = vector.load %arg7[%c0_5, %c0_6] : memref<3x64xf32, #tpu.memory_space<vmem>>, vector<1x64xf32>
    %c1 = arith.constant 1 : index
    %c0_7 = arith.constant 0 : index
    %4 = vector.load %arg7[%c1, %c0_7] : memref<3x64xf32, #tpu.memory_space<vmem>>, vector<1x64xf32>
    %c2 = arith.constant 2 : index
    %c0_8 = arith.constant 0 : index
    %5 = vector.load %arg7[%c2, %c0_8] : memref<3x64xf32, #tpu.memory_space<vmem>>, vector<1x64xf32>
    %c0_9 = arith.constant 0 : index
    %c0_10 = arith.constant 0 : index
    %c0_11 = arith.constant 0 : index
    %6 = vector.load %arg1[%c0_9, %c0_10, %c0_11] : memref<4x16x8xf32, #tpu.memory_space<vmem>>, vector<1x16x8xf32>
    %7 = vector.shape_cast %6 : vector<1x16x8xf32> to vector<16x8xf32>
    %c0_12 = arith.constant 0 : index
    %c0_13 = arith.constant 0 : index
    %c0_14 = arith.constant 0 : index
    %8 = vector.load %arg2[%c0_12, %c0_13, %c0_14] : memref<4x16x32xf32, #tpu.memory_space<vmem>>, vector<1x16x32xf32>
    %9 = vector.shape_cast %8 : vector<1x16x32xf32> to vector<16x32xf32>
    %c0_15 = arith.constant 0 : index
    %c0_16 = arith.constant 0 : index
    %c0_17 = arith.constant 0 : index
    %10 = vector.load %arg3[%c0_15, %c0_16, %c0_17] : memref<4x8x32xf32, #tpu.memory_space<vmem>>, vector<1x8x32xf32>
    %11 = vector.shape_cast %10 : vector<1x8x32xf32> to vector<8x32xf32>
    %cst = arith.constant dense<0.000000e+00> : vector<16xf32>
    %12 = vector.multi_reduction <add>, %7, %cst [1] : vector<16x8xf32> to vector<16xf32>
    %13 = vector.shape_cast %12 : vector<16xf32> to vector<16x1xf32>
    %14 = tpu.reciprocal %13 : vector<16x1xf32> -> vector<16x1xf32>
    %cst_18 = arith.constant dense<0.000000e+00> : vector<8xf32>
    %15 = vector.multi_reduction <add>, %7, %cst_18 [0] : vector<16x8xf32> to vector<8xf32>
    %16 = vector.shape_cast %15 : vector<8xf32> to vector<1x8xf32>
    %17 = tpu.reciprocal %16 : vector<1x8xf32> -> vector<1x8xf32>
    %18 = vector.broadcast %14 : vector<16x1xf32> to vector<16x8xf32>
    %19 = arith.mulf %7, %18 : vector<16x8xf32>
    %20 = vector.broadcast %17 : vector<1x8xf32> to vector<16x8xf32>
    %21 = arith.mulf %7, %20 : vector<16x8xf32>
    %cst_19 = arith.constant 0.000000e+00 : f32
    %22 = vector.broadcast %cst_19 : f32 to vector<16x8xf32>
    %23 = arith.cmpf ogt, %7, %22 : vector<16x8xf32>
    %24 = arith.extui %23 : vector<16x8xi1> to vector<16x8xi32>
    %25 = arith.sitofp %24 : vector<16x8xi32> to vector<16x8xf32>
    %26 = tpu.concatenate %19, %9 in 1 : vector<16x8xf32>, vector<16x32xf32> -> vector<16x40xf32>
    %cst_20 = arith.constant dense<0.000000e+00> : vector<8x40xf32>
    %27 = tpu.matmul %21, %26, %cst_20 {dimension_numbers = #tpu.dot_dimension_numbers<[0], [0], [1], [1], [0, 1, 1, 1], [], []>} : vector<16x8xf32>, vector<16x40xf32>, vector<8x40xf32> -> vector<8x40xf32>
    %cst_21 = arith.constant dense<0.000000e+00> : vector<8x8xf32>
    %28 = tpu.matmul %25, %19, %cst_21 {dimension_numbers = #tpu.dot_dimension_numbers<[0], [0], [1], [1], [0, 1, 1, 1], [], []>} : vector<16x8xf32>, vector<16x8xf32>, vector<8x8xf32> -> vector<8x8xf32>
    %cst_22 = arith.constant dense<0.000000e+00> : vector<8x192xf32>
    %29 = tpu.matmul %11, %0, %cst_22 {dimension_numbers = #tpu.dot_dimension_numbers<[1], [0], [0], [1], [0, 0, 1, 1], [], []>} : vector<8x32xf32>, vector<32x192xf32>, vector<8x192xf32> -> vector<8x192xf32>
    %30 = vector.extract_strided_slice %27 {offsets = [0, 0], sizes = [8, 8], strides = [1, 1]} : vector<8x40xf32> to vector<8x8xf32>
    %31 = vector.extract_strided_slice %27 {offsets = [0, 8], sizes = [8, 32], strides = [1, 1]} : vector<8x40xf32> to vector<8x32xf32>
    %32 = vector.extract_strided_slice %29 {offsets = [0, 0], sizes = [8, 64], strides = [1, 1]} : vector<8x192xf32> to vector<8x64xf32>
    %33 = vector.extract_strided_slice %29 {offsets = [0, 64], sizes = [8, 128], strides = [1, 1]} : vector<8x192xf32> to vector<8x128xf32>
    %34 = tpu.concatenate %31, %33 in 1 : vector<8x32xf32>, vector<8x128xf32> -> vector<8x160xf32>
    %cst_23 = arith.constant dense<0.000000e+00> : vector<8x160xf32>
    %35 = tpu.matmul %30, %34, %cst_23 {dimension_numbers = #tpu.dot_dimension_numbers<[1], [0], [0], [1], [0, 0, 1, 1], [], []>} : vector<8x8xf32>, vector<8x160xf32>, vector<8x160xf32> -> vector<8x160xf32>
    %36 = vector.extract_strided_slice %35 {offsets = [0, 0], sizes = [8, 32], strides = [1, 1]} : vector<8x160xf32> to vector<8x32xf32>
    %37 = vector.extract_strided_slice %35 {offsets = [0, 32], sizes = [8, 64], strides = [1, 1]} : vector<8x160xf32> to vector<8x64xf32>
    %38 = vector.extract_strided_slice %35 {offsets = [0, 96], sizes = [8, 64], strides = [1, 1]} : vector<8x160xf32> to vector<8x64xf32>
    %cst_24 = arith.constant dense<0.000000e+00> : vector<8x128xf32>
    %39 = tpu.matmul %36, %1, %cst_24 {dimension_numbers = #tpu.dot_dimension_numbers<[1], [0], [0], [1], [0, 0, 1, 1], [], []>} : vector<8x32xf32>, vector<32x128xf32>, vector<8x128xf32> -> vector<8x128xf32>
    %cst_25 = arith.constant dense<0.000000e+00> : vector<8x64xf32>
    %40 = tpu.matmul %28, %37, %cst_25 {dimension_numbers = #tpu.dot_dimension_numbers<[1], [0], [0], [1], [0, 0, 1, 1], [], []>} : vector<8x8xf32>, vector<8x64xf32>, vector<8x64xf32> -> vector<8x64xf32>
    %cst_26 = arith.constant dense<0.000000e+00> : vector<8xf32>
    %41 = vector.multi_reduction <add>, %19, %cst_26 [0] : vector<16x8xf32> to vector<8xf32>
    %42 = vector.shape_cast %41 : vector<8xf32> to vector<1x8xf32>
    %cst_27 = arith.constant dense<0.000000e+00> : vector<1x64xf32>
    %43 = tpu.matmul %42, %38, %cst_27 {dimension_numbers = #tpu.dot_dimension_numbers<[1], [0], [0], [1], [0, 0, 1, 1], [], []>} : vector<1x8xf32>, vector<8x64xf32>, vector<1x64xf32> -> vector<1x64xf32>
    %44 = vector.extract_strided_slice %39 {offsets = [0, 0], sizes = [8, 64], strides = [1, 1]} : vector<8x128xf32> to vector<8x64xf32>
    %45 = vector.extract_strided_slice %39 {offsets = [0, 64], sizes = [8, 64], strides = [1, 1]} : vector<8x128xf32> to vector<8x64xf32>
    %cst_28 = arith.constant dense<0.000000e+00> : vector<64xf32>
    %46 = vector.multi_reduction <add>, %45, %cst_28 [0] : vector<8x64xf32> to vector<64xf32>
    %47 = vector.shape_cast %46 : vector<64xf32> to vector<1x64xf32>
    %48 = arith.addf %32, %44 : vector<8x64xf32>
    %49 = arith.addf %48, %40 : vector<8x64xf32>
    %50 = vector.broadcast %43 : vector<1x64xf32> to vector<8x64xf32>
    %51 = arith.addf %49, %50 : vector<8x64xf32>
    %52 = vector.broadcast %47 : vector<1x64xf32> to vector<8x64xf32>
    %53 = arith.addf %51, %52 : vector<8x64xf32>
    %54 = vector.broadcast %3 : vector<1x64xf32> to vector<8x64xf32>
    %55 = arith.addf %53, %54 : vector<8x64xf32>
    %cst_29 = arith.constant 0.000000e+00 : f32
    %56 = vector.broadcast %cst_29 : f32 to vector<8x64xf32>
    %57 = arith.maximumf %55, %56 : vector<8x64xf32>
    %cst_30 = arith.constant dense<0.000000e+00> : vector<8x64xf32>
    %58 = tpu.matmul %57, %2, %cst_30 {dimension_numbers = #tpu.dot_dimension_numbers<[1], [0], [0], [1], [0, 0, 1, 1], [], []>} : vector<8x64xf32>, vector<64x64xf32>, vector<8x64xf32> -> vector<8x64xf32>
    %59 = vector.broadcast %4 : vector<1x64xf32> to vector<8x64xf32>
    %60 = arith.addf %58, %59 : vector<8x64xf32>
    %cst_31 = arith.constant 0.000000e+00 : f32
    %61 = vector.broadcast %cst_31 : f32 to vector<8x64xf32>
    %62 = arith.maximumf %60, %61 : vector<8x64xf32>
    %63 = vector.broadcast %5 : vector<1x64xf32> to vector<8x64xf32>
    %64 = arith.mulf %62, %63 : vector<8x64xf32>
    %cst_32 = arith.constant dense<0.000000e+00> : vector<8xf32>
    %65 = vector.multi_reduction <add>, %64, %cst_32 [1] : vector<8x64xf32> to vector<8xf32>
    %c1_33 = arith.constant 1 : index
    %c0_34 = arith.constant 0 : index
    %c0_35 = arith.constant 0 : index
    %66 = vector.load %arg1[%c1_33, %c0_34, %c0_35] : memref<4x16x8xf32, #tpu.memory_space<vmem>>, vector<1x16x8xf32>
    %67 = vector.shape_cast %66 : vector<1x16x8xf32> to vector<16x8xf32>
    %c1_36 = arith.constant 1 : index
    %c0_37 = arith.constant 0 : index
    %c0_38 = arith.constant 0 : index
    %68 = vector.load %arg2[%c1_36, %c0_37, %c0_38] : memref<4x16x32xf32, #tpu.memory_space<vmem>>, vector<1x16x32xf32>
    %69 = vector.shape_cast %68 : vector<1x16x32xf32> to vector<16x32xf32>
    %c1_39 = arith.constant 1 : index
    %c0_40 = arith.constant 0 : index
    %c0_41 = arith.constant 0 : index
    %70 = vector.load %arg3[%c1_39, %c0_40, %c0_41] : memref<4x8x32xf32, #tpu.memory_space<vmem>>, vector<1x8x32xf32>
    %71 = vector.shape_cast %70 : vector<1x8x32xf32> to vector<8x32xf32>
    %cst_42 = arith.constant dense<0.000000e+00> : vector<16xf32>
    %72 = vector.multi_reduction <add>, %67, %cst_42 [1] : vector<16x8xf32> to vector<16xf32>
    %73 = vector.shape_cast %72 : vector<16xf32> to vector<16x1xf32>
    %74 = tpu.reciprocal %73 : vector<16x1xf32> -> vector<16x1xf32>
    %cst_43 = arith.constant dense<0.000000e+00> : vector<8xf32>
    %75 = vector.multi_reduction <add>, %67, %cst_43 [0] : vector<16x8xf32> to vector<8xf32>
    %76 = vector.shape_cast %75 : vector<8xf32> to vector<1x8xf32>
    %77 = tpu.reciprocal %76 : vector<1x8xf32> -> vector<1x8xf32>
    %78 = vector.broadcast %74 : vector<16x1xf32> to vector<16x8xf32>
    %79 = arith.mulf %67, %78 : vector<16x8xf32>
    %80 = vector.broadcast %77 : vector<1x8xf32> to vector<16x8xf32>
    %81 = arith.mulf %67, %80 : vector<16x8xf32>
    %cst_44 = arith.constant 0.000000e+00 : f32
    %82 = vector.broadcast %cst_44 : f32 to vector<16x8xf32>
    %83 = arith.cmpf ogt, %67, %82 : vector<16x8xf32>
    %84 = arith.extui %83 : vector<16x8xi1> to vector<16x8xi32>
    %85 = arith.sitofp %84 : vector<16x8xi32> to vector<16x8xf32>
    %86 = tpu.concatenate %79, %69 in 1 : vector<16x8xf32>, vector<16x32xf32> -> vector<16x40xf32>
    %cst_45 = arith.constant dense<0.000000e+00> : vector<8x40xf32>
    %87 = tpu.matmul %81, %86, %cst_45 {dimension_numbers = #tpu.dot_dimension_numbers<[0], [0], [1], [1], [0, 1, 1, 1], [], []>} : vector<16x8xf32>, vector<16x40xf32>, vector<8x40xf32> -> vector<8x40xf32>
    %cst_46 = arith.constant dense<0.000000e+00> : vector<8x8xf32>
    %88 = tpu.matmul %85, %79, %cst_46 {dimension_numbers = #tpu.dot_dimension_numbers<[0], [0], [1], [1], [0, 1, 1, 1], [], []>} : vector<16x8xf32>, vector<16x8xf32>, vector<8x8xf32> -> vector<8x8xf32>
    %cst_47 = arith.constant dense<0.000000e+00> : vector<8x192xf32>
    %89 = tpu.matmul %71, %0, %cst_47 {dimension_numbers = #tpu.dot_dimension_numbers<[1], [0], [0], [1], [0, 0, 1, 1], [], []>} : vector<8x32xf32>, vector<32x192xf32>, vector<8x192xf32> -> vector<8x192xf32>
    %90 = vector.extract_strided_slice %87 {offsets = [0, 0], sizes = [8, 8], strides = [1, 1]} : vector<8x40xf32> to vector<8x8xf32>
    %91 = vector.extract_strided_slice %87 {offsets = [0, 8], sizes = [8, 32], strides = [1, 1]} : vector<8x40xf32> to vector<8x32xf32>
    %92 = vector.extract_strided_slice %89 {offsets = [0, 0], sizes = [8, 64], strides = [1, 1]} : vector<8x192xf32> to vector<8x64xf32>
    %93 = vector.extract_strided_slice %89 {offsets = [0, 64], sizes = [8, 128], strides = [1, 1]} : vector<8x192xf32> to vector<8x128xf32>
    %94 = tpu.concatenate %91, %93 in 1 : vector<8x32xf32>, vector<8x128xf32> -> vector<8x160xf32>
    %cst_48 = arith.constant dense<0.000000e+00> : vector<8x160xf32>
    %95 = tpu.matmul %90, %94, %cst_48 {dimension_numbers = #tpu.dot_dimension_numbers<[1], [0], [0], [1], [0, 0, 1, 1], [], []>} : vector<8x8xf32>, vector<8x160xf32>, vector<8x160xf32> -> vector<8x160xf32>
    %96 = vector.extract_strided_slice %95 {offsets = [0, 0], sizes = [8, 32], strides = [1, 1]} : vector<8x160xf32> to vector<8x32xf32>
    %97 = vector.extract_strided_slice %95 {offsets = [0, 32], sizes = [8, 64], strides = [1, 1]} : vector<8x160xf32> to vector<8x64xf32>
    %98 = vector.extract_strided_slice %95 {offsets = [0, 96], sizes = [8, 64], strides = [1, 1]} : vector<8x160xf32> to vector<8x64xf32>
    %cst_49 = arith.constant dense<0.000000e+00> : vector<8x128xf32>
    %99 = tpu.matmul %96, %1, %cst_49 {dimension_numbers = #tpu.dot_dimension_numbers<[1], [0], [0], [1], [0, 0, 1, 1], [], []>} : vector<8x32xf32>, vector<32x128xf32>, vector<8x128xf32> -> vector<8x128xf32>
    %cst_50 = arith.constant dense<0.000000e+00> : vector<8x64xf32>
    %100 = tpu.matmul %88, %97, %cst_50 {dimension_numbers = #tpu.dot_dimension_numbers<[1], [0], [0], [1], [0, 0, 1, 1], [], []>} : vector<8x8xf32>, vector<8x64xf32>, vector<8x64xf32> -> vector<8x64xf32>
    %cst_51 = arith.constant dense<0.000000e+00> : vector<8xf32>
    %101 = vector.multi_reduction <add>, %79, %cst_51 [0] : vector<16x8xf32> to vector<8xf32>
    %102 = vector.shape_cast %101 : vector<8xf32> to vector<1x8xf32>
    %cst_52 = arith.constant dense<0.000000e+00> : vector<1x64xf32>
    %103 = tpu.matmul %102, %98, %cst_52 {dimension_numbers = #tpu.dot_dimension_numbers<[1], [0], [0], [1], [0, 0, 1, 1], [], []>} : vector<1x8xf32>, vector<8x64xf32>, vector<1x64xf32> -> vector<1x64xf32>
    %104 = vector.extract_strided_slice %99 {offsets = [0, 0], sizes = [8, 64], strides = [1, 1]} : vector<8x128xf32> to vector<8x64xf32>
    %105 = vector.extract_strided_slice %99 {offsets = [0, 64], sizes = [8, 64], strides = [1, 1]} : vector<8x128xf32> to vector<8x64xf32>
    %cst_53 = arith.constant dense<0.000000e+00> : vector<64xf32>
    %106 = vector.multi_reduction <add>, %105, %cst_53 [0] : vector<8x64xf32> to vector<64xf32>
    %107 = vector.shape_cast %106 : vector<64xf32> to vector<1x64xf32>
    %108 = arith.addf %92, %104 : vector<8x64xf32>
    %109 = arith.addf %108, %100 : vector<8x64xf32>
    %110 = vector.broadcast %103 : vector<1x64xf32> to vector<8x64xf32>
    %111 = arith.addf %109, %110 : vector<8x64xf32>
    %112 = vector.broadcast %107 : vector<1x64xf32> to vector<8x64xf32>
    %113 = arith.addf %111, %112 : vector<8x64xf32>
    %114 = vector.broadcast %3 : vector<1x64xf32> to vector<8x64xf32>
    %115 = arith.addf %113, %114 : vector<8x64xf32>
    %cst_54 = arith.constant 0.000000e+00 : f32
    %116 = vector.broadcast %cst_54 : f32 to vector<8x64xf32>
    %117 = arith.maximumf %115, %116 : vector<8x64xf32>
    %cst_55 = arith.constant dense<0.000000e+00> : vector<8x64xf32>
    %118 = tpu.matmul %117, %2, %cst_55 {dimension_numbers = #tpu.dot_dimension_numbers<[1], [0], [0], [1], [0, 0, 1, 1], [], []>} : vector<8x64xf32>, vector<64x64xf32>, vector<8x64xf32> -> vector<8x64xf32>
    %119 = vector.broadcast %4 : vector<1x64xf32> to vector<8x64xf32>
    %120 = arith.addf %118, %119 : vector<8x64xf32>
    %cst_56 = arith.constant 0.000000e+00 : f32
    %121 = vector.broadcast %cst_56 : f32 to vector<8x64xf32>
    %122 = arith.maximumf %120, %121 : vector<8x64xf32>
    %123 = vector.broadcast %5 : vector<1x64xf32> to vector<8x64xf32>
    %124 = arith.mulf %122, %123 : vector<8x64xf32>
    %cst_57 = arith.constant dense<0.000000e+00> : vector<8xf32>
    %125 = vector.multi_reduction <add>, %124, %cst_57 [1] : vector<8x64xf32> to vector<8xf32>
    %c2_58 = arith.constant 2 : index
    %c0_59 = arith.constant 0 : index
    %c0_60 = arith.constant 0 : index
    %126 = vector.load %arg1[%c2_58, %c0_59, %c0_60] : memref<4x16x8xf32, #tpu.memory_space<vmem>>, vector<1x16x8xf32>
    %127 = vector.shape_cast %126 : vector<1x16x8xf32> to vector<16x8xf32>
    %c2_61 = arith.constant 2 : index
    %c0_62 = arith.constant 0 : index
    %c0_63 = arith.constant 0 : index
    %128 = vector.load %arg2[%c2_61, %c0_62, %c0_63] : memref<4x16x32xf32, #tpu.memory_space<vmem>>, vector<1x16x32xf32>
    %129 = vector.shape_cast %128 : vector<1x16x32xf32> to vector<16x32xf32>
    %c2_64 = arith.constant 2 : index
    %c0_65 = arith.constant 0 : index
    %c0_66 = arith.constant 0 : index
    %130 = vector.load %arg3[%c2_64, %c0_65, %c0_66] : memref<4x8x32xf32, #tpu.memory_space<vmem>>, vector<1x8x32xf32>
    %131 = vector.shape_cast %130 : vector<1x8x32xf32> to vector<8x32xf32>
    %cst_67 = arith.constant dense<0.000000e+00> : vector<16xf32>
    %132 = vector.multi_reduction <add>, %127, %cst_67 [1] : vector<16x8xf32> to vector<16xf32>
    %133 = vector.shape_cast %132 : vector<16xf32> to vector<16x1xf32>
    %134 = tpu.reciprocal %133 : vector<16x1xf32> -> vector<16x1xf32>
    %cst_68 = arith.constant dense<0.000000e+00> : vector<8xf32>
    %135 = vector.multi_reduction <add>, %127, %cst_68 [0] : vector<16x8xf32> to vector<8xf32>
    %136 = vector.shape_cast %135 : vector<8xf32> to vector<1x8xf32>
    %137 = tpu.reciprocal %136 : vector<1x8xf32> -> vector<1x8xf32>
    %138 = vector.broadcast %134 : vector<16x1xf32> to vector<16x8xf32>
    %139 = arith.mulf %127, %138 : vector<16x8xf32>
    %140 = vector.broadcast %137 : vector<1x8xf32> to vector<16x8xf32>
    %141 = arith.mulf %127, %140 : vector<16x8xf32>
    %cst_69 = arith.constant 0.000000e+00 : f32
    %142 = vector.broadcast %cst_69 : f32 to vector<16x8xf32>
    %143 = arith.cmpf ogt, %127, %142 : vector<16x8xf32>
    %144 = arith.extui %143 : vector<16x8xi1> to vector<16x8xi32>
    %145 = arith.sitofp %144 : vector<16x8xi32> to vector<16x8xf32>
    %146 = tpu.concatenate %139, %129 in 1 : vector<16x8xf32>, vector<16x32xf32> -> vector<16x40xf32>
    %cst_70 = arith.constant dense<0.000000e+00> : vector<8x40xf32>
    %147 = tpu.matmul %141, %146, %cst_70 {dimension_numbers = #tpu.dot_dimension_numbers<[0], [0], [1], [1], [0, 1, 1, 1], [], []>} : vector<16x8xf32>, vector<16x40xf32>, vector<8x40xf32> -> vector<8x40xf32>
    %cst_71 = arith.constant dense<0.000000e+00> : vector<8x8xf32>
    %148 = tpu.matmul %145, %139, %cst_71 {dimension_numbers = #tpu.dot_dimension_numbers<[0], [0], [1], [1], [0, 1, 1, 1], [], []>} : vector<16x8xf32>, vector<16x8xf32>, vector<8x8xf32> -> vector<8x8xf32>
    %cst_72 = arith.constant dense<0.000000e+00> : vector<8x192xf32>
    %149 = tpu.matmul %131, %0, %cst_72 {dimension_numbers = #tpu.dot_dimension_numbers<[1], [0], [0], [1], [0, 0, 1, 1], [], []>} : vector<8x32xf32>, vector<32x192xf32>, vector<8x192xf32> -> vector<8x192xf32>
    %150 = vector.extract_strided_slice %147 {offsets = [0, 0], sizes = [8, 8], strides = [1, 1]} : vector<8x40xf32> to vector<8x8xf32>
    %151 = vector.extract_strided_slice %147 {offsets = [0, 8], sizes = [8, 32], strides = [1, 1]} : vector<8x40xf32> to vector<8x32xf32>
    %152 = vector.extract_strided_slice %149 {offsets = [0, 0], sizes = [8, 64], strides = [1, 1]} : vector<8x192xf32> to vector<8x64xf32>
    %153 = vector.extract_strided_slice %149 {offsets = [0, 64], sizes = [8, 128], strides = [1, 1]} : vector<8x192xf32> to vector<8x128xf32>
    %154 = tpu.concatenate %151, %153 in 1 : vector<8x32xf32>, vector<8x128xf32> -> vector<8x160xf32>
    %cst_73 = arith.constant dense<0.000000e+00> : vector<8x160xf32>
    %155 = tpu.matmul %150, %154, %cst_73 {dimension_numbers = #tpu.dot_dimension_numbers<[1], [0], [0], [1], [0, 0, 1, 1], [], []>} : vector<8x8xf32>, vector<8x160xf32>, vector<8x160xf32> -> vector<8x160xf32>
    %156 = vector.extract_strided_slice %155 {offsets = [0, 0], sizes = [8, 32], strides = [1, 1]} : vector<8x160xf32> to vector<8x32xf32>
    %157 = vector.extract_strided_slice %155 {offsets = [0, 32], sizes = [8, 64], strides = [1, 1]} : vector<8x160xf32> to vector<8x64xf32>
    %158 = vector.extract_strided_slice %155 {offsets = [0, 96], sizes = [8, 64], strides = [1, 1]} : vector<8x160xf32> to vector<8x64xf32>
    %cst_74 = arith.constant dense<0.000000e+00> : vector<8x128xf32>
    %159 = tpu.matmul %156, %1, %cst_74 {dimension_numbers = #tpu.dot_dimension_numbers<[1], [0], [0], [1], [0, 0, 1, 1], [], []>} : vector<8x32xf32>, vector<32x128xf32>, vector<8x128xf32> -> vector<8x128xf32>
    %cst_75 = arith.constant dense<0.000000e+00> : vector<8x64xf32>
    %160 = tpu.matmul %148, %157, %cst_75 {dimension_numbers = #tpu.dot_dimension_numbers<[1], [0], [0], [1], [0, 0, 1, 1], [], []>} : vector<8x8xf32>, vector<8x64xf32>, vector<8x64xf32> -> vector<8x64xf32>
    %cst_76 = arith.constant dense<0.000000e+00> : vector<8xf32>
    %161 = vector.multi_reduction <add>, %139, %cst_76 [0] : vector<16x8xf32> to vector<8xf32>
    %162 = vector.shape_cast %161 : vector<8xf32> to vector<1x8xf32>
    %cst_77 = arith.constant dense<0.000000e+00> : vector<1x64xf32>
    %163 = tpu.matmul %162, %158, %cst_77 {dimension_numbers = #tpu.dot_dimension_numbers<[1], [0], [0], [1], [0, 0, 1, 1], [], []>} : vector<1x8xf32>, vector<8x64xf32>, vector<1x64xf32> -> vector<1x64xf32>
    %164 = vector.extract_strided_slice %159 {offsets = [0, 0], sizes = [8, 64], strides = [1, 1]} : vector<8x128xf32> to vector<8x64xf32>
    %165 = vector.extract_strided_slice %159 {offsets = [0, 64], sizes = [8, 64], strides = [1, 1]} : vector<8x128xf32> to vector<8x64xf32>
    %cst_78 = arith.constant dense<0.000000e+00> : vector<64xf32>
    %166 = vector.multi_reduction <add>, %165, %cst_78 [0] : vector<8x64xf32> to vector<64xf32>
    %167 = vector.shape_cast %166 : vector<64xf32> to vector<1x64xf32>
    %168 = arith.addf %152, %164 : vector<8x64xf32>
    %169 = arith.addf %168, %160 : vector<8x64xf32>
    %170 = vector.broadcast %163 : vector<1x64xf32> to vector<8x64xf32>
    %171 = arith.addf %169, %170 : vector<8x64xf32>
    %172 = vector.broadcast %167 : vector<1x64xf32> to vector<8x64xf32>
    %173 = arith.addf %171, %172 : vector<8x64xf32>
    %174 = vector.broadcast %3 : vector<1x64xf32> to vector<8x64xf32>
    %175 = arith.addf %173, %174 : vector<8x64xf32>
    %cst_79 = arith.constant 0.000000e+00 : f32
    %176 = vector.broadcast %cst_79 : f32 to vector<8x64xf32>
    %177 = arith.maximumf %175, %176 : vector<8x64xf32>
    %cst_80 = arith.constant dense<0.000000e+00> : vector<8x64xf32>
    %178 = tpu.matmul %177, %2, %cst_80 {dimension_numbers = #tpu.dot_dimension_numbers<[1], [0], [0], [1], [0, 0, 1, 1], [], []>} : vector<8x64xf32>, vector<64x64xf32>, vector<8x64xf32> -> vector<8x64xf32>
    %179 = vector.broadcast %4 : vector<1x64xf32> to vector<8x64xf32>
    %180 = arith.addf %178, %179 : vector<8x64xf32>
    %cst_81 = arith.constant 0.000000e+00 : f32
    %181 = vector.broadcast %cst_81 : f32 to vector<8x64xf32>
    %182 = arith.maximumf %180, %181 : vector<8x64xf32>
    %183 = vector.broadcast %5 : vector<1x64xf32> to vector<8x64xf32>
    %184 = arith.mulf %182, %183 : vector<8x64xf32>
    %cst_82 = arith.constant dense<0.000000e+00> : vector<8xf32>
    %185 = vector.multi_reduction <add>, %184, %cst_82 [1] : vector<8x64xf32> to vector<8xf32>
    %c3 = arith.constant 3 : index
    %c0_83 = arith.constant 0 : index
    %c0_84 = arith.constant 0 : index
    %186 = vector.load %arg1[%c3, %c0_83, %c0_84] : memref<4x16x8xf32, #tpu.memory_space<vmem>>, vector<1x16x8xf32>
    %187 = vector.shape_cast %186 : vector<1x16x8xf32> to vector<16x8xf32>
    %c3_85 = arith.constant 3 : index
    %c0_86 = arith.constant 0 : index
    %c0_87 = arith.constant 0 : index
    %188 = vector.load %arg2[%c3_85, %c0_86, %c0_87] : memref<4x16x32xf32, #tpu.memory_space<vmem>>, vector<1x16x32xf32>
    %189 = vector.shape_cast %188 : vector<1x16x32xf32> to vector<16x32xf32>
    %c3_88 = arith.constant 3 : index
    %c0_89 = arith.constant 0 : index
    %c0_90 = arith.constant 0 : index
    %190 = vector.load %arg3[%c3_88, %c0_89, %c0_90] : memref<4x8x32xf32, #tpu.memory_space<vmem>>, vector<1x8x32xf32>
    %191 = vector.shape_cast %190 : vector<1x8x32xf32> to vector<8x32xf32>
    %cst_91 = arith.constant dense<0.000000e+00> : vector<16xf32>
    %192 = vector.multi_reduction <add>, %187, %cst_91 [1] : vector<16x8xf32> to vector<16xf32>
    %193 = vector.shape_cast %192 : vector<16xf32> to vector<16x1xf32>
    %194 = tpu.reciprocal %193 : vector<16x1xf32> -> vector<16x1xf32>
    %cst_92 = arith.constant dense<0.000000e+00> : vector<8xf32>
    %195 = vector.multi_reduction <add>, %187, %cst_92 [0] : vector<16x8xf32> to vector<8xf32>
    %196 = vector.shape_cast %195 : vector<8xf32> to vector<1x8xf32>
    %197 = tpu.reciprocal %196 : vector<1x8xf32> -> vector<1x8xf32>
    %198 = vector.broadcast %194 : vector<16x1xf32> to vector<16x8xf32>
    %199 = arith.mulf %187, %198 : vector<16x8xf32>
    %200 = vector.broadcast %197 : vector<1x8xf32> to vector<16x8xf32>
    %201 = arith.mulf %187, %200 : vector<16x8xf32>
    %cst_93 = arith.constant 0.000000e+00 : f32
    %202 = vector.broadcast %cst_93 : f32 to vector<16x8xf32>
    %203 = arith.cmpf ogt, %187, %202 : vector<16x8xf32>
    %204 = arith.extui %203 : vector<16x8xi1> to vector<16x8xi32>
    %205 = arith.sitofp %204 : vector<16x8xi32> to vector<16x8xf32>
    %206 = tpu.concatenate %199, %189 in 1 : vector<16x8xf32>, vector<16x32xf32> -> vector<16x40xf32>
    %cst_94 = arith.constant dense<0.000000e+00> : vector<8x40xf32>
    %207 = tpu.matmul %201, %206, %cst_94 {dimension_numbers = #tpu.dot_dimension_numbers<[0], [0], [1], [1], [0, 1, 1, 1], [], []>} : vector<16x8xf32>, vector<16x40xf32>, vector<8x40xf32> -> vector<8x40xf32>
    %cst_95 = arith.constant dense<0.000000e+00> : vector<8x8xf32>
    %208 = tpu.matmul %205, %199, %cst_95 {dimension_numbers = #tpu.dot_dimension_numbers<[0], [0], [1], [1], [0, 1, 1, 1], [], []>} : vector<16x8xf32>, vector<16x8xf32>, vector<8x8xf32> -> vector<8x8xf32>
    %cst_96 = arith.constant dense<0.000000e+00> : vector<8x192xf32>
    %209 = tpu.matmul %191, %0, %cst_96 {dimension_numbers = #tpu.dot_dimension_numbers<[1], [0], [0], [1], [0, 0, 1, 1], [], []>} : vector<8x32xf32>, vector<32x192xf32>, vector<8x192xf32> -> vector<8x192xf32>
    %210 = vector.extract_strided_slice %207 {offsets = [0, 0], sizes = [8, 8], strides = [1, 1]} : vector<8x40xf32> to vector<8x8xf32>
    %211 = vector.extract_strided_slice %207 {offsets = [0, 8], sizes = [8, 32], strides = [1, 1]} : vector<8x40xf32> to vector<8x32xf32>
    %212 = vector.extract_strided_slice %209 {offsets = [0, 0], sizes = [8, 64], strides = [1, 1]} : vector<8x192xf32> to vector<8x64xf32>
    %213 = vector.extract_strided_slice %209 {offsets = [0, 64], sizes = [8, 128], strides = [1, 1]} : vector<8x192xf32> to vector<8x128xf32>
    %214 = tpu.concatenate %211, %213 in 1 : vector<8x32xf32>, vector<8x128xf32> -> vector<8x160xf32>
    %cst_97 = arith.constant dense<0.000000e+00> : vector<8x160xf32>
    %215 = tpu.matmul %210, %214, %cst_97 {dimension_numbers = #tpu.dot_dimension_numbers<[1], [0], [0], [1], [0, 0, 1, 1], [], []>} : vector<8x8xf32>, vector<8x160xf32>, vector<8x160xf32> -> vector<8x160xf32>
    %216 = vector.extract_strided_slice %215 {offsets = [0, 0], sizes = [8, 32], strides = [1, 1]} : vector<8x160xf32> to vector<8x32xf32>
    %217 = vector.extract_strided_slice %215 {offsets = [0, 32], sizes = [8, 64], strides = [1, 1]} : vector<8x160xf32> to vector<8x64xf32>
    %218 = vector.extract_strided_slice %215 {offsets = [0, 96], sizes = [8, 64], strides = [1, 1]} : vector<8x160xf32> to vector<8x64xf32>
    %cst_98 = arith.constant dense<0.000000e+00> : vector<8x128xf32>
    %219 = tpu.matmul %216, %1, %cst_98 {dimension_numbers = #tpu.dot_dimension_numbers<[1], [0], [0], [1], [0, 0, 1, 1], [], []>} : vector<8x32xf32>, vector<32x128xf32>, vector<8x128xf32> -> vector<8x128xf32>
    %cst_99 = arith.constant dense<0.000000e+00> : vector<8x64xf32>
    %220 = tpu.matmul %208, %217, %cst_99 {dimension_numbers = #tpu.dot_dimension_numbers<[1], [0], [0], [1], [0, 0, 1, 1], [], []>} : vector<8x8xf32>, vector<8x64xf32>, vector<8x64xf32> -> vector<8x64xf32>
    %cst_100 = arith.constant dense<0.000000e+00> : vector<8xf32>
    %221 = vector.multi_reduction <add>, %199, %cst_100 [0] : vector<16x8xf32> to vector<8xf32>
    %222 = vector.shape_cast %221 : vector<8xf32> to vector<1x8xf32>
    %cst_101 = arith.constant dense<0.000000e+00> : vector<1x64xf32>
    %223 = tpu.matmul %222, %218, %cst_101 {dimension_numbers = #tpu.dot_dimension_numbers<[1], [0], [0], [1], [0, 0, 1, 1], [], []>} : vector<1x8xf32>, vector<8x64xf32>, vector<1x64xf32> -> vector<1x64xf32>
    %224 = vector.extract_strided_slice %219 {offsets = [0, 0], sizes = [8, 64], strides = [1, 1]} : vector<8x128xf32> to vector<8x64xf32>
    %225 = vector.extract_strided_slice %219 {offsets = [0, 64], sizes = [8, 64], strides = [1, 1]} : vector<8x128xf32> to vector<8x64xf32>
    %cst_102 = arith.constant dense<0.000000e+00> : vector<64xf32>
    %226 = vector.multi_reduction <add>, %225, %cst_102 [0] : vector<8x64xf32> to vector<64xf32>
    %227 = vector.shape_cast %226 : vector<64xf32> to vector<1x64xf32>
    %228 = arith.addf %212, %224 : vector<8x64xf32>
    %229 = arith.addf %228, %220 : vector<8x64xf32>
    %230 = vector.broadcast %223 : vector<1x64xf32> to vector<8x64xf32>
    %231 = arith.addf %229, %230 : vector<8x64xf32>
    %232 = vector.broadcast %227 : vector<1x64xf32> to vector<8x64xf32>
    %233 = arith.addf %231, %232 : vector<8x64xf32>
    %234 = vector.broadcast %3 : vector<1x64xf32> to vector<8x64xf32>
    %235 = arith.addf %233, %234 : vector<8x64xf32>
    %cst_103 = arith.constant 0.000000e+00 : f32
    %236 = vector.broadcast %cst_103 : f32 to vector<8x64xf32>
    %237 = arith.maximumf %235, %236 : vector<8x64xf32>
    %cst_104 = arith.constant dense<0.000000e+00> : vector<8x64xf32>
    %238 = tpu.matmul %237, %2, %cst_104 {dimension_numbers = #tpu.dot_dimension_numbers<[1], [0], [0], [1], [0, 0, 1, 1], [], []>} : vector<8x64xf32>, vector<64x64xf32>, vector<8x64xf32> -> vector<8x64xf32>
    %239 = vector.broadcast %4 : vector<1x64xf32> to vector<8x64xf32>
    %240 = arith.addf %238, %239 : vector<8x64xf32>
    %cst_105 = arith.constant 0.000000e+00 : f32
    %241 = vector.broadcast %cst_105 : f32 to vector<8x64xf32>
    %242 = arith.maximumf %240, %241 : vector<8x64xf32>
    %243 = vector.broadcast %5 : vector<1x64xf32> to vector<8x64xf32>
    %244 = arith.mulf %242, %243 : vector<8x64xf32>
    %cst_106 = arith.constant dense<0.000000e+00> : vector<8xf32>
    %245 = vector.multi_reduction <add>, %244, %cst_106 [1] : vector<8x64xf32> to vector<8xf32>
    %246 = vector.shape_cast %65 : vector<8xf32> to vector<1x8xf32>
    %247 = vector.shape_cast %125 : vector<8xf32> to vector<1x8xf32>
    %248 = vector.shape_cast %185 : vector<8xf32> to vector<1x8xf32>
    %249 = vector.shape_cast %245 : vector<8xf32> to vector<1x8xf32>
    %250 = tpu.concatenate %246, %247, %248, %249 in 0 : vector<1x8xf32>, vector<1x8xf32>, vector<1x8xf32>, vector<1x8xf32> -> vector<4x8xf32>
    %c0_107 = arith.constant 0 : index
    %c0_108 = arith.constant 0 : index
    %c0_109 = arith.constant 0 : index
    %251 = vector.load %arg8[%c0_107, %c0_108, %c0_109] : memref<1x4x8xf32, #tpu.memory_space<vmem>>, vector<1x4x8xf32>
    %252 = vector.shape_cast %251 : vector<1x4x8xf32> to vector<4x8xf32>
    %253 = vector.shape_cast %250 : vector<4x8xf32> to vector<1x4x8xf32>
    tpu.vector_store %arg8[%c0_107, %c0_108, %c0_109], %253 {strides = array<i32>} : memref<1x4x8xf32, #tpu.memory_space<vmem>>, vector<1x4x8xf32>,
    return
  }
  func.func @transform_0(%arg0: i32) -> (i32, i32, i32) {
    %c0_i32 = arith.constant 0 : i32
    %c0_i32_0 = arith.constant 0 : i32
    %c0_i32_1 = arith.constant 0 : i32
    return %arg0, %c0_i32, %c0_i32_0 : i32, i32, i32
  }
  func.func @transform_1(%arg0: i32) -> (i32, i32, i32) {
    %c0_i32 = arith.constant 0 : i32
    %c0_i32_0 = arith.constant 0 : i32
    %c0_i32_1 = arith.constant 0 : i32
    return %arg0, %c0_i32, %c0_i32_0 : i32, i32, i32
  }
  func.func @transform_2(%arg0: i32) -> (i32, i32, i32) {
    %c0_i32 = arith.constant 0 : i32
    %c0_i32_0 = arith.constant 0 : i32
    %c0_i32_1 = arith.constant 0 : i32
    return %arg0, %c0_i32, %c0_i32_0 : i32, i32, i32
  }
  func.func @transform_3(%arg0: i32) -> (i32, i32) {
    %c0_i32 = arith.constant 0 : i32
    %c0_i32_0 = arith.constant 0 : i32
    %c0_i32_1 = arith.constant 0 : i32
    return %c0_i32, %c0_i32_0 : i32, i32
  }
  func.func @transform_4(%arg0: i32) -> (i32, i32) {
    %c0_i32 = arith.constant 0 : i32
    %c0_i32_0 = arith.constant 0 : i32
    %c0_i32_1 = arith.constant 0 : i32
    return %c0_i32, %c0_i32_0 : i32, i32
  }
  func.func @transform_5(%arg0: i32) -> (i32, i32) {
    %c0_i32 = arith.constant 0 : i32
    %c0_i32_0 = arith.constant 0 : i32
    %c0_i32_1 = arith.constant 0 : i32
    return %c0_i32, %c0_i32_0 : i32, i32
  }
  func.func @transform_6(%arg0: i32) -> (i32, i32) {
    %c0_i32 = arith.constant 0 : i32
    %c0_i32_0 = arith.constant 0 : i32
    %c0_i32_1 = arith.constant 0 : i32
    return %c0_i32, %c0_i32_0 : i32, i32
  }
  func.func @transform_7(%arg0: i32) -> (i32, i32, i32) {
    %c0_i32 = arith.constant 0 : i32
    %c0_i32_0 = arith.constant 0 : i32
    %c0_i32_1 = arith.constant 0 : i32
    return %arg0, %c0_i32, %c0_i32_0 : i32, i32, i32
  }
}

</mosaic_0001>

<llo_original>
// kernel: tpu_custom_call.1
$region0: #{tpu_custom_call.1}
  #allocation0 [shape = 'u32[]', space=smem, size = 0x4, offset = 0x4, fixed_abs, tag = 'smem constant byte address 0x4 - core index']
  #allocation1 [shape = 'u32[72,128]{1,0:T(1,128)}', space=vmem, size = 0x9000, scoped, tag = 'internal scratch']
  %s0 = inlined_call_operand.vmem [shape: f32[8,16,8], index: 0, kind: input, shape index: {}]
  %s1 = inlined_call_operand.vmem [shape: f32[8,16,32], index: 1, kind: input, shape index: {}]
  %s2 = inlined_call_operand.vmem [shape: f32[8,8,32], index: 2, kind: input, shape index: {}]
  %s3 = inlined_call_operand.hbm [shape: f32[32,192], index: 3, kind: input, shape index: {}]
  %s4 = inlined_call_operand.hbm [shape: f32[32,128], index: 4, kind: input, shape index: {}]
  %s5 = inlined_call_operand.hbm [shape: f32[64,64], index: 5, kind: input, shape index: {}]
  %s6 = inlined_call_operand.vmem [shape: f32[3,64], index: 6, kind: input, shape index: {}]
  %s7 = inlined_call_operand.hbm [shape: f32[2,4,8], index: 7, kind: output, shape index: {}]
  %s8 = sld [smem:[#allocation0]]
  $region73: #{tpu_custom_call.1} parent=0
    _
  %s10 = ssub.s32 1, %s8
  %s11 = scalar_select 0, %s10, %s8
  $region1: #{tpu_custom_call.1} parent=0
    #allocation2 [shape = 'u8[32768]{0}', space=vmem, size = 0x8000, scoped, tag = 'input window, operand 3, single buffered']
    #allocation3 [shape = 's32[2]{0}', space=sflag, size = 0x8, scoped, tag = 'scoped memory for tpu_custom_call.1']
    #allocation4 [shape = 's32[2]{0}', space=sflag, size = 0x8, scoped, tag = 'scoped memory for tpu_custom_call.1']
    #allocation5 [shape = 'u8[16384]{0}', space=vmem, size = 0x4000, scoped, tag = 'input window, operand 4, single buffered']
    #allocation6 [shape = 's32[1]{0}', space=sflag, size = 0x4, scoped, tag = 'scoped memory for tpu_custom_call.1']
    #allocation7 [shape = 'u8[32768]{0}', space=vmem, size = 0x8000, scoped, tag = 'input window, operand 5, single buffered']
    #allocation8 [shape = 'u8[4096]{0}', space=vmem, size = 0x1000, scoped, tag = 'output window, operand 0']
    %12 = vsyncpa [#allocation3], 0
    %13 = vsyncpa [#allocation6], 0
    %14 = vsyncpa [#allocation4], 0
    %s15 = scalar_lea.sflag [#allocation4], 1
    %16 = vsyncpa %s15, 0
    loop: start=0, step=1, limit=4
    $region2: #{tpu_custom_call.1} parent=1 // loop_pre_header
      _
    $region3: #{tpu_custom_call.1} parent=1 // loop_header
      %s18 = sphi 0, %s22
      %p19 = scmp.ge.s32.totalorder %s18, 4
      %s28 = sphi 0, %s30
      %s31 = sphi 0, %s28
      %s32 = sphi 0, %s31
      %s48 = sphi 0, %s32
      %s54 = sphi 0, %s56
      %s57 = sphi 0, %s54
      %s58 = sphi 0, %s57
      %s74 = sphi 0, %s58
      %s80 = sphi 0, %s82
      %s83 = sphi 0, %s80
      %s84 = sphi 0, %s83
      %s100 = sphi 0, %s84
      %s104 = sphi 0, %s104
      %s106 = sphi 0, %s104
      %s107 = sphi 0, %s106
      %s121 = sphi 0, %s107
      %s125 = sphi 0, %s125
      %s127 = sphi 0, %s125
      %s128 = sphi 0, %s127
      %s142 = sphi 0, %s128
      %s146 = sphi 0, %s146
      %s148 = sphi 0, %s146
      %s149 = sphi 0, %s148
      %s163 = sphi 0, %s149
      %s167 = sphi 0, %s167
      %s169 = sphi 0, %s167
      %s170 = sphi 0, %s169
      %s184 = sphi 0, %s170
      %s190 = sphi 0, %s192
      %s193 = sphi 0, %s190
      %s194 = sphi 0, %s193
      %s210 = sphi 0, %s194
    $region4: #{tpu_custom_call.1} parent=1 // loop_header_branch
      %21 = sbr.rel (%p19) target = $region8
    $region5: #{tpu_custom_call.1} parent=1 // loop_body
      %s23 = ssub.s32 %s18, 1
      %s24 = ssub.s32 %s18, 2
      %s25 = sadd.s32 %s18, 1
      %s26 = ssub.s32 %s18, %s25
      %p27 = scmp.eq.s32.totalorder %s26, 0
      %s29 = sadd.s32 %s28, 1
      %s30 = scalar_select %p27, %s28, %s29
      %p33 = pneg %p27
      %p34 = scmp.eq.s32.totalorder %s18, 1
      %p35 = por %p33, %p34
      %p36 = scmp.ne.s32.totalorder %s28, %s31
      %p37 = scmp.eq.s32.totalorder %s18, 0
      %p38 = por %p36, %p37
      %p39 = scmp.ne.s32.totalorder %s28, %s31
      %p40 = scmp.eq.s32.totalorder %s23, 1
      %p41 = por %p39, %p40
      %p42 = scmp.ne.s32.totalorder %s31, %s32
      %p43 = scmp.eq.s32.totalorder %s23, 0
      %p44 = por %p42, %p43
      %p45 = scmp.ne.s32.totalorder %s31, %s32
      %p46 = scmp.eq.s32.totalorder %s24, 1
      %p47 = por %p45, %p46
      %p49 = scmp.ne.s32.totalorder %s32, %s48
      %p50 = scmp.eq.s32.totalorder %s24, 0
      %p51 = por %p49, %p50
      %s52 = ssub.s32 %s18, %s25
      %p53 = scmp.eq.s32.totalorder %s52, 0
      %s55 = sadd.s32 %s54, 1
      %s56 = scalar_select %p53, %s54, %s55
      %p59 = pneg %p53
      %p60 = scmp.eq.s32.totalorder %s18, 1
      %p61 = por %p59, %p60
      %p62 = scmp.ne.s32.totalorder %s54, %s57
      %p63 = scmp.eq.s32.totalorder %s18, 0
      %p64 = por %p62, %p63
      %p65 = scmp.ne.s32.totalorder %s54, %s57
      %p66 = scmp.eq.s32.totalorder %s23, 1
      %p67 = por %p65, %p66
      %p68 = scmp.ne.s32.totalorder %s57, %s58
      %p69 = scmp.eq.s32.totalorder %s23, 0
      %p70 = por %p68, %p69
      %p71 = scmp.ne.s32.totalorder %s57, %s58
      %p72 = scmp.eq.s32.totalorder %s24, 1
      %p73 = por %p71, %p72
      %p75 = scmp.ne.s32.totalorder %s58, %s74
      %p76 = scmp.eq.s32.totalorder %s24, 0
      %p77 = por %p75, %p76
      %s78 = ssub.s32 %s18, %s25
      %p79 = scmp.eq.s32.totalorder %s78, 0
      %s81 = sadd.s32 %s80, 1
      %s82 = scalar_select %p79, %s80, %s81
      %p85 = pneg %p79
      %p86 = scmp.eq.s32.totalorder %s18, 1
      %p87 = por %p85, %p86
      %p88 = scmp.ne.s32.totalorder %s80, %s83
      %p89 = scmp.eq.s32.totalorder %s18, 0
      %p90 = por %p88, %p89
      %p91 = scmp.ne.s32.totalorder %s80, %s83
      %p92 = scmp.eq.s32.totalorder %s23, 1
      %p93 = por %p91, %p92
      %p94 = scmp.ne.s32.totalorder %s83, %s84
      %p95 = scmp.eq.s32.totalorder %s23, 0
      %p96 = por %p94, %p95
      %p97 = scmp.ne.s32.totalorder %s83, %s84
      %p98 = scmp.eq.s32.totalorder %s24, 1
      %p99 = por %p97, %p98
      %p101 = scmp.ne.s32.totalorder %s84, %s100
      %p102 = scmp.eq.s32.totalorder %s24, 0
      %p103 = por %p101, %p102
      %s105 = sadd.s32 %s104, 1
      %p108 = scmp.eq.s32.totalorder %s18, 1
      %p109 = scmp.ne.s32.totalorder %s104, %s106
      %p110 = scmp.eq.s32.totalorder %s18, 0
      %p111 = por %p109, %p110
      %p112 = scmp.ne.s32.totalorder %s104, %s106
      %p113 = scmp.eq.s32.totalorder %s23, 1
      %p114 = por %p112, %p113
      %p115 = scmp.ne.s32.totalorder %s106, %s107
      %p116 = scmp.eq.s32.totalorder %s23, 0
      %p117 = por %p115, %p116
      %p118 = scmp.ne.s32.totalorder %s106, %s107
      %p119 = scmp.eq.s32.totalorder %s24, 1
      %p120 = por %p118, %p119
      %p122 = scmp.ne.s32.totalorder %s107, %s121
      %p123 = scmp.eq.s32.totalorder %s24, 0
      %p124 = por %p122, %p123
      %s126 = sadd.s32 %s125, 1
      %p129 = scmp.eq.s32.totalorder %s18, 1
      %p130 = scmp.ne.s32.totalorder %s125, %s127
      %p131 = scmp.eq.s32.totalorder %s18, 0
      %p132 = por %p130, %p131
      %p133 = scmp.ne.s32.totalorder %s125, %s127
      %p134 = scmp.eq.s32.totalorder %s23, 1
      %p135 = por %p133, %p134
      %p136 = scmp.ne.s32.totalorder %s127, %s128
      %p137 = scmp.eq.s32.totalorder %s23, 0
      %p138 = por %p136, %p137
      %p139 = scmp.ne.s32.totalorder %s127, %s128
      %p140 = scmp.eq.s32.totalorder %s24, 1
      %p141 = por %p139, %p140
      %p143 = scmp.ne.s32.totalorder %s128, %s142
      %p144 = scmp.eq.s32.totalorder %s24, 0
      %p145 = por %p143, %p144
      %s147 = sadd.s32 %s146, 1
      %p150 = scmp.eq.s32.totalorder %s18, 1
      %p151 = scmp.ne.s32.totalorder %s146, %s148
      %p152 = scmp.eq.s32.totalorder %s18, 0
      %p153 = por %p151, %p152
      %p154 = scmp.ne.s32.totalorder %s146, %s148
      %p155 = scmp.eq.s32.totalorder %s23, 1
      %p156 = por %p154, %p155
      %p157 = scmp.ne.s32.totalorder %s148, %s149
      %p158 = scmp.eq.s32.totalorder %s23, 0
      %p159 = por %p157, %p158
      %p160 = scmp.ne.s32.totalorder %s148, %s149
      %p161 = scmp.eq.s32.totalorder %s24, 1
      %p162 = por %p160, %p161
      %p164 = scmp.ne.s32.totalorder %s149, %s163
      %p165 = scmp.eq.s32.totalorder %s24, 0
      %p166 = por %p164, %p165
      %s168 = sadd.s32 %s167, 1
      %p171 = scmp.eq.s32.totalorder %s18, 1
      %p172 = scmp.ne.s32.totalorder %s167, %s169
      %p173 = scmp.eq.s32.totalorder %s18, 0
      %p174 = por %p172, %p173
      %p175 = scmp.ne.s32.totalorder %s167, %s169
      %p176 = scmp.eq.s32.totalorder %s23, 1
      %p177 = por %p175, %p176
      %p178 = scmp.ne.s32.totalorder %s169, %s170
      %p179 = scmp.eq.s32.totalorder %s23, 0
      %p180 = por %p178, %p179
      %p181 = scmp.ne.s32.totalorder %s169, %s170
      %p182 = scmp.eq.s32.totalorder %s24, 1
      %p183 = por %p181, %p182
      %p185 = scmp.ne.s32.totalorder %s170, %s184
      %p186 = scmp.eq.s32.totalorder %s24, 0
      %p187 = por %p185, %p186
      %s188 = ssub.s32 %s18, %s25
      %p189 = scmp.eq.s32.totalorder %s188, 0
      %s191 = sadd.s32 %s190, 1
      %s192 = scalar_select %p189, %s190, %s191
      %p195 = pneg %p189
      %p196 = scmp.eq.s32.totalorder %s18, 1
      %p197 = por %p195, %p196
      %p198 = scmp.ne.s32.totalorder %s190, %s193
      %p199 = scmp.eq.s32.totalorder %s18, 0
      %p200 = por %p198, %p199
      %p201 = scmp.ne.s32.totalorder %s190, %s193
      %p202 = scmp.eq.s32.totalorder %s23, 1
      %p203 = por %p201, %p202
      %p204 = scmp.ne.s32.totalorder %s193, %s194
      %p205 = scmp.eq.s32.totalorder %s23, 0
      %p206 = por %p204, %p205
      %p207 = scmp.ne.s32.totalorder %s193, %s194
      %p208 = scmp.eq.s32.totalorder %s24, 1
      %p209 = por %p207, %p208
      %p211 = scmp.ne.s32.totalorder %s194, %s210
      %p212 = scmp.eq.s32.totalorder %s24, 0
      %p213 = por %p211, %p212
      %p214 = scmp.le.s32.totalorder 1, %s18
      %p215 = scmp.lt.s32.totalorder %s18, 3
      %p216 = pnand %p214, %p215
      %p217 = pneg %p216
      // Predicated region
      $region9: #{tpu_custom_call.1} parent=5 // pred_check
        _
      $region10: #{tpu_custom_call.1} parent=5 // pred_check_branch
        %219 = sbr.rel (%p216) target = $region12
      $region11: #{tpu_custom_call.1} parent=5 // pred_region
        %s220 = ssub.s32 %s18, 1
        // Predicated region
        $region13: #{tpu_custom_call.1} parent=11 // pred_check
          %p221 = pneg %p117
        $region14: #{tpu_custom_call.1} parent=11 // pred_check_branch
          %223 = sbr.rel (%p221) target = $region16
        $region15: #{tpu_custom_call.1} parent=11 // pred_region
          %225 = vsyncadd [#allocation3], 0
          %s226 = sshll.u32 %s3, 4
          %s227 = int_to_ptr.hbm [resolvable:$true] %s226
          %s228 = sshll.u32 [#allocation2], 4
          %s229 = int_to_ptr.vmem [resolvable:$true] %s228
          %234 = dma.hbm_to_vmem [thread:$0]  %s227, 1024, %s229, [#allocation3], 256, 256, 16
        $region16: #{tpu_custom_call.1} parent=11 // pred_fallthru
          _
        // Predicated region
        $region17: #{tpu_custom_call.1} parent=11 // pred_check
          %p235 = pneg %p138
        $region18: #{tpu_custom_call.1} parent=11 // pred_check_branch
          %237 = sbr.rel (%p235) target = $region20
        $region19: #{tpu_custom_call.1} parent=11 // pred_region
          %239 = vsyncadd [#allocation6], 0
          %s240 = sshll.u32 %s4, 4
          %s241 = int_to_ptr.hbm [resolvable:$true] %s240
          %s242 = sshll.u32 [#allocation5], 4
          %s243 = int_to_ptr.vmem [resolvable:$true] %s242
          %248 = dma.hbm_to_vmem [thread:$0]  %s241, 512, %s243, [#allocation6], 128, 128, 8
        $region20: #{tpu_custom_call.1} parent=11 // pred_fallthru
          _
        // Predicated region
        $region21: #{tpu_custom_call.1} parent=11 // pred_check
          %p249 = pneg %p159
        $region22: #{tpu_custom_call.1} parent=11 // pred_check_branch
          %251 = sbr.rel (%p249) target = $region24
        $region23: #{tpu_custom_call.1} parent=11 // pred_region
          %253 = vsyncadd [#allocation6], 0
          %s254 = sshll.u32 %s5, 4
          %s255 = int_to_ptr.hbm [resolvable:$true] %s254
          %s256 = sshll.u32 [#allocation7], 4
          %s257 = int_to_ptr.vmem [resolvable:$true] %s256
          %262 = dma.hbm_to_vmem [thread:$0]  %s255, 1024, %s257, [#allocation6], 128, 128, 8
        $region24: #{tpu_custom_call.1} parent=11 // pred_fallthru
          _
        // Predicated region
        $region25: #{tpu_custom_call.1} parent=11 // pred_check
          %p263 = pneg %p180
        $region26: #{tpu_custom_call.1} parent=11 // pred_check_branch
          %265 = sbr.rel (%p263) target = $region28
        $region27: #{tpu_custom_call.1} parent=11 // pred_region
          _
        $region28: #{tpu_custom_call.1} parent=11 // pred_fallthru
          _
      $region12: #{tpu_custom_call.1} parent=5 // pred_fallthru
        _
      %p266 = scmp.lt.s32.totalorder %s18, 2
      // Predicated region
      $region29: #{tpu_custom_call.1} parent=5 // pred_check
        %p267 = pneg %p266
      $region30: #{tpu_custom_call.1} parent=5 // pred_check_branch
        %269 = sbr.rel (%p267) target = $region32
      $region31: #{tpu_custom_call.1} parent=5 // pred_region
        // Predicated region
        $region33: #{tpu_custom_call.1} parent=31 // pred_check
          %p270 = pneg %p38
        $region34: #{tpu_custom_call.1} parent=31 // pred_check_branch
          %272 = sbr.rel (%p270) target = $region36
        $region35: #{tpu_custom_call.1} parent=31 // pred_region
          %s273 = smul.u32 4, %s18
          %p274 = scmp.lt.s32.totalorder %s273, 7
          %s275 = scalar_select %p274, %s273, 7
          %s276 = smul.addr %s275, 2
          %s277 = smul.addr %s276, 8
          %s278 = scalar_lea.vmem %s0, %s277
          %s279 = smul.u32 4, %s18
        $region36: #{tpu_custom_call.1} parent=31 // pred_fallthru
          _
        // Predicated region
        $region37: #{tpu_custom_call.1} parent=31 // pred_check
          %p280 = pneg %p64
        $region38: #{tpu_custom_call.1} parent=31 // pred_check_branch
          %282 = sbr.rel (%p280) target = $region40
        $region39: #{tpu_custom_call.1} parent=31 // pred_region
          %s283 = smul.u32 4, %s18
          %p284 = scmp.lt.s32.totalorder %s283, 7
          %s285 = scalar_select %p284, %s283, 7
          %s286 = smul.addr %s285, 2
          %s287 = smul.addr %s286, 8
          %s288 = scalar_lea.vmem %s1, %s287
          %s289 = smul.u32 4, %s18
        $region40: #{tpu_custom_call.1} parent=31 // pred_fallthru
          _
        // Predicated region
        $region41: #{tpu_custom_call.1} parent=31 // pred_check
          %p290 = pneg %p90
        $region42: #{tpu_custom_call.1} parent=31 // pred_check_branch
          %292 = sbr.rel (%p290) target = $region44
        $region43: #{tpu_custom_call.1} parent=31 // pred_region
          %s293 = smul.u32 4, %s18
          %p294 = scmp.lt.s32.totalorder %s293, 7
          %s295 = scalar_select %p294, %s293, 7
          %s296 = smul.addr %s295, 8
          %s297 = scalar_lea.vmem %s2, %s296
          %s298 = smul.u32 4, %s18
        $region44: #{tpu_custom_call.1} parent=31 // pred_fallthru
          _
      $region32: #{tpu_custom_call.1} parent=5 // pred_fallthru
        _
      %p299 = scmp.le.s32.totalorder 1, %s18
      %p300 = scmp.lt.s32.totalorder %s18, 3
      %p301 = pnand %p299, %p300
      %p302 = pneg %p301
      // Predicated region
      $region45: #{tpu_custom_call.1} parent=5 // pred_check
        _
      $region46: #{tpu_custom_call.1} parent=5 // pred_check_branch
        %304 = sbr.rel (%p301) target = $region48
      $region47: #{tpu_custom_call.1} parent=5 // pred_region
        %s305 = ssub.s32 %s18, 1
        // Predicated region
        $region49: #{tpu_custom_call.1} parent=47 // pred_check
          %p306 = pneg %p117
        $region50: #{tpu_custom_call.1} parent=47 // pred_check_branch
          %308 = sbr.rel (%p306) target = $region52
        $region51: #{tpu_custom_call.1} parent=47 // pred_region
          %310 = dma.done [#allocation3], 1024
        $region52: #{tpu_custom_call.1} parent=47 // pred_fallthru
          _
        // Predicated region
        $region53: #{tpu_custom_call.1} parent=47 // pred_check
          %p311 = pneg %p138
        $region54: #{tpu_custom_call.1} parent=47 // pred_check_branch
          %313 = sbr.rel (%p311) target = $region56
        $region55: #{tpu_custom_call.1} parent=47 // pred_region
          %315 = dma.done [#allocation6], 512
        $region56: #{tpu_custom_call.1} parent=47 // pred_fallthru
          _
        // Predicated region
        $region57: #{tpu_custom_call.1} parent=47 // pred_check
          %p316 = pneg %p159
        $region58: #{tpu_custom_call.1} parent=47 // pred_check_branch
          %318 = sbr.rel (%p316) target = $region60
        $region59: #{tpu_custom_call.1} parent=47 // pred_region
          %320 = dma.done [#allocation6], 1024
        $region60: #{tpu_custom_call.1} parent=47 // pred_fallthru
          _
        %s321 = smul.u32 4, %s23
        %p322 = scmp.lt.s32.totalorder %s321, 7
        %s323 = scalar_select %p322, %s321, 7
        %s324 = smul.addr %s323, 2
        %s325 = smul.addr %s324, 8
        %s326 = scalar_lea.vmem %s0, %s325
        %p327 = pneg %p44
        %p328 = pneg %p41
        %s329 = smul.u32 4, %s23
        %p330 = scmp.lt.s32.totalorder %s329, 7
        %s331 = scalar_select %p330, %s329, 7
        %s332 = smul.addr %s331, 2
        %s333 = smul.addr %s332, 8
        %s334 = scalar_lea.vmem %s1, %s333
        %p335 = pneg %p70
        %p336 = pneg %p67
        %s337 = smul.u32 4, %s23
        %p338 = scmp.lt.s32.totalorder %s337, 7
        %s339 = scalar_select %p338, %s337, 7
        %s340 = smul.addr %s339, 8
        %s341 = scalar_lea.vmem %s2, %s340
        %p342 = pneg %p96
        %p343 = pneg %p93
        %p344 = pneg %p117
        %p345 = pneg %p114
        %p346 = pneg %p138
        %p347 = pneg %p135
        %p348 = pneg %p159
        %p349 = pneg %p156
        %p350 = pneg %p180
        %p351 = pneg %p177
        %p352 = pneg %p206
        %p353 = pneg %p203
        %s354 = sand.u32 %s193, 1
        %s355 = scalar_lea.sflag [#allocation4], %s354
        %s356 = sand.u32 %s193, 1
        %s357 = smul.addr %s356, 4
        %s358 = scalar_lea.vmem [#allocation8], %s357
        %s359 = smul.u32 4, %s23
        %p360 = scmp.lt.s32.totalorder %s359, 7
        %s361 = scalar_select %p360, %s359, 7
        %s362 = smul.addr %s361, 2
        %s363 = smul.addr %s362, 8
        %s364 = scalar_lea.vmem %s0, %s363
        %s365 = smul.u32 4, %s23
        %s366 = smul.u32 4, %s23
        %p367 = scmp.lt.s32.totalorder %s366, 7
        %s368 = scalar_select %p367, %s366, 7
        %s369 = smul.addr %s368, 2
        %s370 = smul.addr %s369, 8
        %s371 = scalar_lea.vmem %s1, %s370
        %s372 = smul.u32 4, %s23
        %s373 = smul.u32 4, %s23
        %p374 = scmp.lt.s32.totalorder %s373, 7
        %s375 = scalar_select %p374, %s373, 7
        %s376 = smul.addr %s375, 8
        %s377 = scalar_lea.vmem %s2, %s376
        %s378 = smul.u32 4, %s23
        %v379 = vld [vmem:[#allocation2] sm:$0xff]
        %v380 = vld [vmem:[#allocation2 + $0x8] sm:$0xff]
        %v381 = vld [vmem:[#allocation2 + $0x10] sm:$0xff]
        %v382 = vld [vmem:[#allocation2 + $0x18] sm:$0xff]
        %v383 = vld [vmem:[#allocation2 + $0x20] sm:$0xff]
        %v384 = vld [vmem:[#allocation2 + $0x28] sm:$0xff]
        %v385 = vld [vmem:[#allocation2 + $0x30] sm:$0xff]
        %v386 = vld [vmem:[#allocation2 + $0x38] sm:$0xff]
        %v387 = vld [vmem:[#allocation5] sm:$0xff]
        %v388 = vld [vmem:[#allocation5 + $0x8] sm:$0xff]
        %v389 = vld [vmem:[#allocation5 + $0x10] sm:$0xff]
        %v390 = vld [vmem:[#allocation5 + $0x18] sm:$0xff]
        %v391 = vld [vmem:[#allocation7] sm:$0xff]
        %v392 = vld [vmem:[#allocation7 + $0x8] sm:$0xff]
        %v393 = vld [vmem:[#allocation7 + $0x10] sm:$0xff]
        %v394 = vld [vmem:[#allocation7 + $0x18] sm:$0xff]
        %v395 = vld [vmem:[#allocation7 + $0x20] sm:$0xff]
        %v396 = vld [vmem:[#allocation7 + $0x28] sm:$0xff]
        %v397 = vld [vmem:[#allocation7 + $0x30] sm:$0xff]
        %v398 = vld [vmem:[#allocation7 + $0x38] sm:$0xff]
        %v399 = vld [vmem:[%s6] sm:$0x1]
        %v400 = vld [vmem:[%s6 + $0x1] sm:$0x1]
        %v401 = vld [vmem:[%s6 + $0x2] sm:$0x1]
        %v402 = vld [vmem:[%s364] sm:$0xff]
        %v403 = vld [vmem:[%s364 + $0x8] sm:$0xff]
        %v404 = vld [vmem:[%s371] sm:$0xff]
        %v405 = vld [vmem:[%s371 + $0x8] sm:$0xff]
        %v406 = vld [vmem:[%s377] sm:$0xff]
        %vm407 = vcmask 64512
        %v408 = vsel %vm407, %v402, 0.0
        %409 = vadd.xlane.f32.xlu0 %v408
        %v410 = vpop.xlane.xlu0 %409
        %v411 = vsel %vm407, %v403, 0.0
        %412 = vadd.xlane.f32.xlu0 %v411
        %v413 = vpop.xlane.xlu0 %412
        %v414 = vrcp.pop %v410
        %v415 = vmul.f32 %v410, %v414
        %v416 = vsub.f32 1.0, %v415
        %v417 = vmul.f32 %v414, %v416
        %v418 = vadd.f32 %v414, %v417
        %vm419 = vweird.f32 %v410
        %vm420 = vweird.f32 %v414
        %vm421 = vmor %vm419, %vm420
        %v422 = vsel %vm421, %v414, %v418
        %v423 = vand.u32 2147483647, %v410
        %vm424 = vcmp.eq.f32.partialorder %v423, 8.507059e+37
        %v425 = vand.u32 %v410, 2147483648
        %v426 = vor.u32 1.1754944e-38, %v425
        %v427 = vsel %vm424, %v426, %v422
        %v428 = vrcp.pop %v413
        %v429 = vmul.f32 %v413, %v428
        %v430 = vsub.f32 1.0, %v429
        %v431 = vmul.f32 %v428, %v430
        %v432 = vadd.f32 %v428, %v431
        %vm433 = vweird.f32 %v413
        %vm434 = vweird.f32 %v428
        %vm435 = vmor %vm433, %vm434
        %v436 = vsel %vm435, %v428, %v432
        %v437 = vand.u32 2147483647, %v413
        %vm438 = vcmp.eq.f32.partialorder %v437, 8.507059e+37
        %v439 = vand.u32 %v413, 2147483648
        %v440 = vor.u32 1.1754944e-38, %v439
        %v441 = vsel %vm438, %v440, %v436
        %v442 = vadd.f32 %v408, %v411
        %v443 = vrot.slane %v442, 4
        %v444 = vadd.f32 %v442, %v443
        %v445 = vrot.slane %v444, 2
        %v446 = vadd.f32 %v444, %v445
        %v447 = vrot.slane %v446, 1
        %v448 = vadd.f32 %v446, %v447
        %v449 = vrcp.pop %v448
        %v450 = vmul.f32 %v448, %v449
        %v451 = vsub.f32 1.0, %v450
        %v452 = vmul.f32 %v449, %v451
        %v453 = vadd.f32 %v449, %v452
        %vm454 = vweird.f32 %v448
        %vm455 = vweird.f32 %v449
        %vm456 = vmor %vm454, %vm455
        %v457 = vsel %vm456, %v449, %v453
        %v458 = vand.u32 2147483647, %v448
        %vm459 = vcmp.eq.f32.partialorder %v458, 8.507059e+37
        %v460 = vand.u32 %v448, 2147483648
        %v461 = vor.u32 1.1754944e-38, %v460
        %v462 = vsel %vm459, %v461, %v457
        %v463 = vmul.f32 %v402, %v427
        %v464 = vmul.f32 %v403, %v441
        %v465 = vmul.f32 %v402, %v462
        %v466 = vmul.f32 %v403, %v462
        %vm467 = vcmp.gt.f32.partialorder %v402, 0.0
        %vm468 = vcmp.gt.f32.partialorder %v403, 0.0
        %v469 = vsel %vm467, 1, 0
        %v470 = vsel %vm468, 1, 0
        %v471 = vcvt.s32.f32 %v469
        %v472 = vcvt.s32.f32 %v470
        %475 = vrot.lane.b32.xlu0 %v404, 8
        %v476 = vpop.permute.xlu0 %475
        %477 = vrot.lane.b32.xlu0 %v405, 8
        %v478 = vpop.permute.xlu0 %477
        %v481 = vsel %vm407, %v463, %v476
        %v482 = vsel %vm407, %v464, %v478
        %483 = vxpose.xlu0.b32.start [1/16] %v465, 128
        %484 = vxpose.xlu0.b32.cont [2/16] %v466, 128
        %485 = vxpose.xlu0.b32.cont [3/16] 0.0, 128
        %486 = vxpose.xlu0.b32.cont [4/16] 0.0, 128
        %487 = vxpose.xlu0.b32.cont [5/16] 0.0, 128
        %488 = vxpose.xlu0.b32.cont [6/16] 0.0, 128
        %489 = vxpose.xlu0.b32.cont [7/16] 0.0, 128
        %490 = vxpose.xlu0.b32.cont [8/16] 0.0, 128
        %491 = vxpose.xlu0.b32.cont [9/16] 0.0, 128
        %492 = vxpose.xlu0.b32.cont [10/16] 0.0, 128
        %493 = vxpose.xlu0.b32.cont [11/16] 0.0, 128
        %494 = vxpose.xlu0.b32.cont [12/16] 0.0, 128
        %495 = vxpose.xlu0.b32.cont [13/16] 0.0, 128
        %496 = vxpose.xlu0.b32.cont [14/16] 0.0, 128
        %497 = vxpose.xlu0.b32.cont [15/16] 0.0, 128
        %498 = vxpose.xlu0.b32.end [16/16] 0.0, 128
        %v499 = vpop.trf.xlu0
        %v500 = vpop.trf.xlu0
        %v501 = vpop.trf.xlu0
        %v502 = vpop.trf.xlu0
        %v503 = vpop.trf.xlu0
        %v504 = vpop.trf.xlu0
        %v505 = vpop.trf.xlu0
        %v506 = vpop.trf.xlu0
        %v507 = vpop.trf.xlu0
        %v508 = vpop.trf.xlu0
        %v509 = vpop.trf.xlu0
        %v510 = vpop.trf.xlu0
        %v511 = vpop.trf.xlu0
        %v512 = vpop.trf.xlu0
        %v513 = vpop.trf.xlu0
        %v514 = vpop.trf.xlu0
        %vm515 = vcmask 130048
        %v517 = vsel %vm515, %v499, 0
        %519 = vmatpush.msra.mxu0 0.0
        %520 = vmatpush.msra.mxu0 0.0
        %521 = vmatpush.msra.mxu0 0.0
        %522 = vmatpush.msra.mxu0 0.0
        %523 = vmatpush.msra.mxu0 0.0
        %524 = vmatpush.msra.mxu0 0.0
        %525 = vmatpush.msra.mxu0 0.0
        %526 = vmatpush.msra.mxu0 0.0
        %527 = vmatpush.msra.mxu0 0.0
        %528 = vmatpush.msra.mxu0 0.0
        %529 = vmatpush.msra.mxu0 0.0
        %530 = vmatpush.msra.mxu0 0.0
        %531 = vmatpush.msra.mxu0 0.0
        %532 = vmatpush.msra.mxu0 0.0
        %533 = vmatpush.msra.mxu0 %v482
        %534 = vmatpush.msra.mxu0 %v481
        %535 = vmatmul.f32.gmra.mxu0 %v517
        %v536 = vpop.f32.mrf.mxu0
        %v537 = vadd.f32 0.0, %v536
        %538 = vdwg.mxu0
        %539 = vxpose.xlu0.b32.start [1/16] %v471, 128
        %540 = vxpose.xlu0.b32.cont [2/16] %v472, 128
        %541 = vxpose.xlu0.b32.cont [3/16] 0.0, 128
        %542 = vxpose.xlu0.b32.cont [4/16] 0.0, 128
        %543 = vxpose.xlu0.b32.cont [5/16] 0.0, 128
        %544 = vxpose.xlu0.b32.cont [6/16] 0.0, 128
        %545 = vxpose.xlu0.b32.cont [7/16] 0.0, 128
        %546 = vxpose.xlu0.b32.cont [8/16] 0.0, 128
        %547 = vxpose.xlu0.b32.cont [9/16] 0.0, 128
        %548 = vxpose.xlu0.b32.cont [10/16] 0.0, 128
        %549 = vxpose.xlu0.b32.cont [11/16] 0.0, 128
        %550 = vxpose.xlu0.b32.cont [12/16] 0.0, 128
        %551 = vxpose.xlu0.b32.cont [13/16] 0.0, 128
        %552 = vxpose.xlu0.b32.cont [14/16] 0.0, 128
        %553 = vxpose.xlu0.b32.cont [15/16] 0.0, 128
        %554 = vxpose.xlu0.b32.end [16/16] 0.0, 128
        %v555 = vpop.trf.xlu0
        %v556 = vpop.trf.xlu0
        %v557 = vpop.trf.xlu0
        %v558 = vpop.trf.xlu0
        %v559 = vpop.trf.xlu0
        %v560 = vpop.trf.xlu0
        %v561 = vpop.trf.xlu0
        %v562 = vpop.trf.xlu0
        %v563 = vpop.trf.xlu0
        %v564 = vpop.trf.xlu0
        %v565 = vpop.trf.xlu0
        %v566 = vpop.trf.xlu0
        %v567 = vpop.trf.xlu0
        %v568 = vpop.trf.xlu0
        %v569 = vpop.trf.xlu0
        %v570 = vpop.trf.xlu0
        %v572 = vsel %vm515, %v555, 0
        %574 = vmatpush.msra.mxu0 0.0
        %575 = vmatpush.msra.mxu0 0.0
        %576 = vmatpush.msra.mxu0 0.0
        %577 = vmatpush.msra.mxu0 0.0
        %578 = vmatpush.msra.mxu0 0.0
        %579 = vmatpush.msra.mxu0 0.0
        %580 = vmatpush.msra.mxu0 0.0
        %581 = vmatpush.msra.mxu0 0.0
        %582 = vmatpush.msra.mxu0 0.0
        %583 = vmatpush.msra.mxu0 0.0
        %584 = vmatpush.msra.mxu0 0.0
        %585 = vmatpush.msra.mxu0 0.0
        %586 = vmatpush.msra.mxu0 0.0
        %587 = vmatpush.msra.mxu0 0.0
        %588 = vmatpush.msra.mxu0 %v464
        %589 = vmatpush.msra.mxu0 %v463
        %590 = vmatmul.f32.gmra.mxu0 %v572
        %v591 = vpop.f32.mrf.mxu0
        %v592 = vadd.f32 0.0, %v591
        %593 = vdwg.mxu0
        %vm594 = vcmask 261120
        %v596 = vsel %vm594, %v406, 0
        %598 = vmatpush.msra.mxu0 0.0
        %599 = vmatpush.msra.mxu0 0.0
        %600 = vmatpush.msra.mxu0 0.0
        %601 = vmatpush.msra.mxu0 0.0
        %602 = vmatpush.msra.mxu0 0.0
        %603 = vmatpush.msra.mxu0 0.0
        %604 = vmatpush.msra.mxu0 0.0
        %605 = vmatpush.msra.mxu0 0.0
        %606 = vmatpush.msra.mxu0 0.0
        %607 = vmatpush.msra.mxu0 0.0
        %608 = vmatpush.msra.mxu0 0.0
        %609 = vmatpush.msra.mxu0 0.0
        %610 = vmatpush.msra.mxu0 %v385
        %611 = vmatpush.msra.mxu0 %v383
        %612 = vmatpush.msra.mxu0 %v381
        %613 = vmatpush.msra.mxu0 %v379
        %614 = vmatmul.f32.gmra.mxu0 %v596
        %v615 = vpop.f32.mrf.mxu0
        %v616 = vadd.f32 0.0, %v615
        %617 = vdwg.mxu0
        %618 = vmatpush.msra.mxu0 0.0
        %619 = vmatpush.msra.mxu0 0.0
        %620 = vmatpush.msra.mxu0 0.0
        %621 = vmatpush.msra.mxu0 0.0
        %622 = vmatpush.msra.mxu0 0.0
        %623 = vmatpush.msra.mxu0 0.0
        %624 = vmatpush.msra.mxu0 0.0
        %625 = vmatpush.msra.mxu0 0.0
        %626 = vmatpush.msra.mxu0 0.0
        %627 = vmatpush.msra.mxu0 0.0
        %628 = vmatpush.msra.mxu0 0.0
        %629 = vmatpush.msra.mxu0 0.0
        %630 = vmatpush.msra.mxu0 %v386
        %631 = vmatpush.msra.mxu0 %v384
        %632 = vmatpush.msra.mxu0 %v382
        %633 = vmatpush.msra.mxu0 %v380
        %634 = vmatmul.f32.gmra.mxu0 %v596
        %v635 = vpop.f32.mrf.mxu0
        %v636 = vadd.f32 0.0, %v635
        %637 = vdwg.mxu0
        %639 = vrot.lane.b32.xlu0 %v537, 120
        %v640 = vpop.permute.xlu0 %639
        %644 = vrot.lane.b32.xlu0 %v616, 96
        %v645 = vpop.permute.xlu0 %644
        %646 = vrot.lane.b32.xlu0 %v636, 96
        %v647 = vpop.permute.xlu0 %646
        %vm648 = vcmask 785408
        %v649 = vsel %vm648, %v645, %v647
        %v652 = vsel %vm594, %v640, %v649
        %v653 = vsel %vm407, %v537, 0
        %655 = vmatpush.msra.mxu0 0.0
        %656 = vmatpush.msra.mxu0 0.0
        %657 = vmatpush.msra.mxu0 0.0
        %658 = vmatpush.msra.mxu0 0.0
        %659 = vmatpush.msra.mxu0 0.0
        %660 = vmatpush.msra.mxu0 0.0
        %661 = vmatpush.msra.mxu0 0.0
        %662 = vmatpush.msra.mxu0 0.0
        %663 = vmatpush.msra.mxu0 0.0
        %664 = vmatpush.msra.mxu0 0.0
        %665 = vmatpush.msra.mxu0 0.0
        %666 = vmatpush.msra.mxu0 0.0
        %667 = vmatpush.msra.mxu0 0.0
        %668 = vmatpush.msra.mxu0 0.0
        %669 = vmatpush.msra.mxu0 0.0
        %670 = vmatpush.msra.mxu0 %v652
        %671 = vmatmul.f32.gmra.mxu0 %v653
        %v672 = vpop.f32.mrf.mxu0
        %v673 = vadd.f32 0.0, %v672
        %674 = vdwg.mxu0
        %675 = vmatpush.msra.mxu0 0.0
        %676 = vmatpush.msra.mxu0 0.0
        %677 = vmatpush.msra.mxu0 0.0
        %678 = vmatpush.msra.mxu0 0.0
        %679 = vmatpush.msra.mxu0 0.0
        %680 = vmatpush.msra.mxu0 0.0
        %681 = vmatpush.msra.mxu0 0.0
        %682 = vmatpush.msra.mxu0 0.0
        %683 = vmatpush.msra.mxu0 0.0
        %684 = vmatpush.msra.mxu0 0.0
        %685 = vmatpush.msra.mxu0 0.0
        %686 = vmatpush.msra.mxu0 0.0
        %687 = vmatpush.msra.mxu0 0.0
        %688 = vmatpush.msra.mxu0 0.0
        %689 = vmatpush.msra.mxu0 0.0
        %690 = vmatpush.msra.mxu0 %v647
        %691 = vmatmul.f32.gmra.mxu0 %v653
        %v692 = vpop.f32.mrf.mxu0
        %v693 = vadd.f32 0.0, %v692
        %694 = vdwg.mxu0
        %v696 = vsel %vm594, %v673, 0
        %698 = vmatpush.msra.mxu0 0.0
        %699 = vmatpush.msra.mxu0 0.0
        %700 = vmatpush.msra.mxu0 0.0
        %701 = vmatpush.msra.mxu0 0.0
        %702 = vmatpush.msra.mxu0 0.0
        %703 = vmatpush.msra.mxu0 0.0
        %704 = vmatpush.msra.mxu0 0.0
        %705 = vmatpush.msra.mxu0 0.0
        %706 = vmatpush.msra.mxu0 0.0
        %707 = vmatpush.msra.mxu0 0.0
        %708 = vmatpush.msra.mxu0 0.0
        %709 = vmatpush.msra.mxu0 0.0
        %710 = vmatpush.msra.mxu0 %v390
        %711 = vmatpush.msra.mxu0 %v389
        %712 = vmatpush.msra.mxu0 %v388
        %713 = vmatpush.msra.mxu0 %v387
        %714 = vmatmul.f32.gmra.mxu0 %v696
        %v715 = vpop.f32.mrf.mxu0
        %v716 = vadd.f32 0.0, %v715
        %717 = vdwg.mxu0
        %718 = vrot.lane.b32.xlu0 %v673, 96
        %v719 = vpop.permute.xlu0 %718
        %v722 = vsel %vm407, %v592, 0
        %724 = vmatpush.msra.mxu0 0.0
        %725 = vmatpush.msra.mxu0 0.0
        %726 = vmatpush.msra.mxu0 0.0
        %727 = vmatpush.msra.mxu0 0.0
        %728 = vmatpush.msra.mxu0 0.0
        %729 = vmatpush.msra.mxu0 0.0
        %730 = vmatpush.msra.mxu0 0.0
        %731 = vmatpush.msra.mxu0 0.0
        %732 = vmatpush.msra.mxu0 0.0
        %733 = vmatpush.msra.mxu0 0.0
        %734 = vmatpush.msra.mxu0 0.0
        %735 = vmatpush.msra.mxu0 0.0
        %736 = vmatpush.msra.mxu0 0.0
        %737 = vmatpush.msra.mxu0 0.0
        %738 = vmatpush.msra.mxu0 0.0
        %739 = vmatpush.msra.mxu0 %v719
        %740 = vmatmul.f32.gmra.mxu0 %v722
        %v741 = vpop.f32.mrf.mxu0
        %v742 = vadd.f32 0.0, %v741
        %743 = vdwg.mxu0
        %v744 = vsel %vm407, %v463, 0.0
        %v745 = vsel %vm407, %v464, 0.0
        %v746 = vadd.f32 %v744, %v745
        %v747 = vrot.slane %v746, 4
        %v748 = vadd.f32 %v746, %v747
        %v749 = vrot.slane %v748, 2
        %v750 = vadd.f32 %v748, %v749
        %v751 = vrot.slane %v750, 1
        %v752 = vadd.f32 %v750, %v751
        %754 = vrot.lane.b32.xlu0 %v673, 32
        %v755 = vpop.permute.xlu0 %754
        %756 = vrot.lane.b32.xlu0 %v693, 32
        %v757 = vpop.permute.xlu0 %756
        %v758 = vsel %vm594, %v755, %v757
        %v761 = vsel %vm407, %v752, 0
        %763 = vmatpush.msra.mxu0 0.0
        %764 = vmatpush.msra.mxu0 0.0
        %765 = vmatpush.msra.mxu0 0.0
        %766 = vmatpush.msra.mxu0 0.0
        %767 = vmatpush.msra.mxu0 0.0
        %768 = vmatpush.msra.mxu0 0.0
        %769 = vmatpush.msra.mxu0 0.0
        %770 = vmatpush.msra.mxu0 0.0
        %771 = vmatpush.msra.mxu0 0.0
        %772 = vmatpush.msra.mxu0 0.0
        %773 = vmatpush.msra.mxu0 0.0
        %774 = vmatpush.msra.mxu0 0.0
        %775 = vmatpush.msra.mxu0 0.0
        %776 = vmatpush.msra.mxu0 0.0
        %777 = vmatpush.msra.mxu0 0.0
        %778 = vmatpush.msra.mxu0 %v758
        %779 = vmatmul.f32.gmra.mxu0 %v761
        %v780 = vpop.f32.mrf.mxu0
        %v781 = vadd.f32 0.0, %v780
        %782 = vdwg.mxu0
        %vm783 = vcmask 1048064
        %v784 = vsel %vm783, %v716, 0.0
        %v785 = vrot.slane %v784, 4
        %v786 = vadd.f32 %v784, %v785
        %v787 = vrot.slane %v786, 2
        %v788 = vadd.f32 %v786, %v787
        %v789 = vrot.slane %v788, 1
        %v790 = vadd.f32 %v788, %v789
        %v791 = vadd.f32 %v616, %v716
        %v792 = vadd.f32 %v791, %v742
        %v793 = vperm.slane %v781, 0
        %v794 = vadd.f32 %v792, %v793
        %796 = vrot.lane.b32.xlu0 %v790, 64
        %v797 = vpop.permute.xlu0 %796
        %v799 = vadd.f32 %v794, %v797
        %v800 = vperm.slane %v399, 0
        %v801 = vadd.f32 %v799, %v800
        %v802 = vmax.f32 %v801, 0.0
        %v803 = vperm.slane %v400, 0
        %vm804 = vcmask 523264
        %v806 = vsel %vm804, %v802, 0
        %808 = vmatpush.msra.mxu0 0.0
        %809 = vmatpush.msra.mxu0 0.0
        %810 = vmatpush.msra.mxu0 0.0
        %811 = vmatpush.msra.mxu0 0.0
        %812 = vmatpush.msra.mxu0 0.0
        %813 = vmatpush.msra.mxu0 0.0
        %814 = vmatpush.msra.mxu0 0.0
        %815 = vmatpush.msra.mxu0 0.0
        %816 = vmatpush.msra.mxu0 %v398
        %817 = vmatpush.msra.mxu0 %v397
        %818 = vmatpush.msra.mxu0 %v396
        %819 = vmatpush.msra.mxu0 %v395
        %820 = vmatpush.msra.mxu0 %v394
        %821 = vmatpush.msra.mxu0 %v393
        %822 = vmatpush.msra.mxu0 %v392
        %823 = vmatpush.msra.mxu0 %v391
        %824 = vmatmul.f32.gmra.mxu0 %v806
        %v825 = vpop.f32.mrf.mxu0
        %v826 = vadd.f32 %v803, %v825
        %827 = vdwg.mxu0
        %v828 = vmax.f32 %v826, 0.0
        %v829 = vperm.slane %v401, 0
        %v830 = vmul.f32 %v828, %v829
        %v831 = vsel %vm804, %v830, 0.0
        %832 = vadd.xlane.f32.xlu0 %v831
        %v833 = vpop.xlane.xlu0 %832
        %s834 = scalar_lea.vmem %s364, 16
        %v835 = vld [vmem:[%s834] sm:$0xff]
        %v836 = vld [vmem:[%s834 + $0x8] sm:$0xff]
        %s837 = scalar_lea.vmem %s371, 16
        %v838 = vld [vmem:[%s837] sm:$0xff]
        %v839 = vld [vmem:[%s837 + $0x8] sm:$0xff]
        %s840 = scalar_lea.vmem %s377, 8
        %v841 = vld [vmem:[%s840] sm:$0xff]
        %v842 = vsel %vm407, %v835, 0.0
        %843 = vadd.xlane.f32.xlu0 %v842
        %v844 = vpop.xlane.xlu0 %843
        %v845 = vsel %vm407, %v836, 0.0
        %846 = vadd.xlane.f32.xlu0 %v845
        %v847 = vpop.xlane.xlu0 %846
        %v848 = vrcp.pop %v844
        %v849 = vmul.f32 %v844, %v848
        %v850 = vsub.f32 1.0, %v849
        %v851 = vmul.f32 %v848, %v850
        %v852 = vadd.f32 %v848, %v851
        %vm853 = vweird.f32 %v844
        %vm854 = vweird.f32 %v848
        %vm855 = vmor %vm853, %vm854
        %v856 = vsel %vm855, %v848, %v852
        %v857 = vand.u32 2147483647, %v844
        %vm858 = vcmp.eq.f32.partialorder %v857, 8.507059e+37
        %v859 = vand.u32 %v844, 2147483648
        %v860 = vor.u32 1.1754944e-38, %v859
        %v861 = vsel %vm858, %v860, %v856
        %v862 = vrcp.pop %v847
        %v863 = vmul.f32 %v847, %v862
        %v864 = vsub.f32 1.0, %v863
        %v865 = vmul.f32 %v862, %v864
        %v866 = vadd.f32 %v862, %v865
        %vm867 = vweird.f32 %v847
        %vm868 = vweird.f32 %v862
        %vm869 = vmor %vm867, %vm868
        %v870 = vsel %vm869, %v862, %v866
        %v871 = vand.u32 2147483647, %v847
        %vm872 = vcmp.eq.f32.partialorder %v871, 8.507059e+37
        %v873 = vand.u32 %v847, 2147483648
        %v874 = vor.u32 1.1754944e-38, %v873
        %v875 = vsel %vm872, %v874, %v870
        %v876 = vadd.f32 %v842, %v845
        %v877 = vrot.slane %v876, 4
        %v878 = vadd.f32 %v876, %v877
        %v879 = vrot.slane %v878, 2
        %v880 = vadd.f32 %v878, %v879
        %v881 = vrot.slane %v880, 1
        %v882 = vadd.f32 %v880, %v881
        %v883 = vrcp.pop %v882
        %v884 = vmul.f32 %v882, %v883
        %v885 = vsub.f32 1.0, %v884
        %v886 = vmul.f32 %v883, %v885
        %v887 = vadd.f32 %v883, %v886
        %vm888 = vweird.f32 %v882
        %vm889 = vweird.f32 %v883
        %vm890 = vmor %vm888, %vm889
        %v891 = vsel %vm890, %v883, %v887
        %v892 = vand.u32 2147483647, %v882
        %vm893 = vcmp.eq.f32.partialorder %v892, 8.507059e+37
        %v894 = vand.u32 %v882, 2147483648
        %v895 = vor.u32 1.1754944e-38, %v894
        %v896 = vsel %vm893, %v895, %v891
        %v897 = vmul.f32 %v835, %v861
        %v898 = vmul.f32 %v836, %v875
        %v899 = vmul.f32 %v835, %v896
        %v900 = vmul.f32 %v836, %v896
        %vm901 = vcmp.gt.f32.partialorder %v835, 0.0
        %vm902 = vcmp.gt.f32.partialorder %v836, 0.0
        %v903 = vsel %vm901, 1, 0
        %v904 = vsel %vm902, 1, 0
        %v905 = vcvt.s32.f32 %v903
        %v906 = vcvt.s32.f32 %v904
        %909 = vrot.lane.b32.xlu0 %v838, 8
        %v910 = vpop.permute.xlu0 %909
        %911 = vrot.lane.b32.xlu0 %v839, 8
        %v912 = vpop.permute.xlu0 %911
        %v915 = vsel %vm407, %v897, %v910
        %v916 = vsel %vm407, %v898, %v912
        %917 = vxpose.xlu0.b32.start [1/16] %v899, 128
        %918 = vxpose.xlu0.b32.cont [2/16] %v900, 128
        %919 = vxpose.xlu0.b32.cont [3/16] 0.0, 128
        %920 = vxpose.xlu0.b32.cont [4/16] 0.0, 128
        %921 = vxpose.xlu0.b32.cont [5/16] 0.0, 128
        %922 = vxpose.xlu0.b32.cont [6/16] 0.0, 128
        %923 = vxpose.xlu0.b32.cont [7/16] 0.0, 128
        %924 = vxpose.xlu0.b32.cont [8/16] 0.0, 128
        %925 = vxpose.xlu0.b32.cont [9/16] 0.0, 128
        %926 = vxpose.xlu0.b32.cont [10/16] 0.0, 128
        %927 = vxpose.xlu0.b32.cont [11/16] 0.0, 128
        %928 = vxpose.xlu0.b32.cont [12/16] 0.0, 128
        %929 = vxpose.xlu0.b32.cont [13/16] 0.0, 128
        %930 = vxpose.xlu0.b32.cont [14/16] 0.0, 128
        %931 = vxpose.xlu0.b32.cont [15/16] 0.0, 128
        %932 = vxpose.xlu0.b32.end [16/16] 0.0, 128
        %v933 = vpop.trf.xlu0
        %v934 = vpop.trf.xlu0
        %v935 = vpop.trf.xlu0
        %v936 = vpop.trf.xlu0
        %v937 = vpop.trf.xlu0
        %v938 = vpop.trf.xlu0
        %v939 = vpop.trf.xlu0
        %v940 = vpop.trf.xlu0
        %v941 = vpop.trf.xlu0
        %v942 = vpop.trf.xlu0
        %v943 = vpop.trf.xlu0
        %v944 = vpop.trf.xlu0
        %v945 = vpop.trf.xlu0
        %v946 = vpop.trf.xlu0
        %v947 = vpop.trf.xlu0
        %v948 = vpop.trf.xlu0
        %v950 = vsel %vm515, %v933, 0
        %952 = vmatpush.msra.mxu0 0.0
        %953 = vmatpush.msra.mxu0 0.0
        %954 = vmatpush.msra.mxu0 0.0
        %955 = vmatpush.msra.mxu0 0.0
        %956 = vmatpush.msra.mxu0 0.0
        %957 = vmatpush.msra.mxu0 0.0
        %958 = vmatpush.msra.mxu0 0.0
        %959 = vmatpush.msra.mxu0 0.0
        %960 = vmatpush.msra.mxu0 0.0
        %961 = vmatpush.msra.mxu0 0.0
        %962 = vmatpush.msra.mxu0 0.0
        %963 = vmatpush.msra.mxu0 0.0
        %964 = vmatpush.msra.mxu0 0.0
        %965 = vmatpush.msra.mxu0 0.0
        %966 = vmatpush.msra.mxu0 %v916
        %967 = vmatpush.msra.mxu0 %v915
        %968 = vmatmul.f32.gmra.mxu0 %v950
        %v969 = vpop.f32.mrf.mxu0
        %v970 = vadd.f32 0.0, %v969
        %971 = vdwg.mxu0
        %972 = vxpose.xlu0.b32.start [1/16] %v905, 128
        %973 = vxpose.xlu0.b32.cont [2/16] %v906, 128
        %974 = vxpose.xlu0.b32.cont [3/16] 0.0, 128
        %975 = vxpose.xlu0.b32.cont [4/16] 0.0, 128
        %976 = vxpose.xlu0.b32.cont [5/16] 0.0, 128
        %977 = vxpose.xlu0.b32.cont [6/16] 0.0, 128
        %978 = vxpose.xlu0.b32.cont [7/16] 0.0, 128
        %979 = vxpose.xlu0.b32.cont [8/16] 0.0, 128
        %980 = vxpose.xlu0.b32.cont [9/16] 0.0, 128
        %981 = vxpose.xlu0.b32.cont [10/16] 0.0, 128
        %982 = vxpose.xlu0.b32.cont [11/16] 0.0, 128
        %983 = vxpose.xlu0.b32.cont [12/16] 0.0, 128
        %984 = vxpose.xlu0.b32.cont [13/16] 0.0, 128
        %985 = vxpose.xlu0.b32.cont [14/16] 0.0, 128
        %986 = vxpose.xlu0.b32.cont [15/16] 0.0, 128
        %987 = vxpose.xlu0.b32.end [16/16] 0.0, 128
        %v988 = vpop.trf.xlu0
        %v989 = vpop.trf.xlu0
        %v990 = vpop.trf.xlu0
        %v991 = vpop.trf.xlu0
        %v992 = vpop.trf.xlu0
        %v993 = vpop.trf.xlu0
        %v994 = vpop.trf.xlu0
        %v995 = vpop.trf.xlu0
        %v996 = vpop.trf.xlu0
        %v997 = vpop.trf.xlu0
        %v998 = vpop.trf.xlu0
        %v999 = vpop.trf.xlu0
        %v1000 = vpop.trf.xlu0
        %v1001 = vpop.trf.xlu0
        %v1002 = vpop.trf.xlu0
        %v1003 = vpop.trf.xlu0
        %v1005 = vsel %vm515, %v988, 0
        %1007 = vmatpush.msra.mxu0 0.0
        %1008 = vmatpush.msra.mxu0 0.0
        %1009 = vmatpush.msra.mxu0 0.0
        %1010 = vmatpush.msra.mxu0 0.0
        %1011 = vmatpush.msra.mxu0 0.0
        %1012 = vmatpush.msra.mxu0 0.0
        %1013 = vmatpush.msra.mxu0 0.0
        %1014 = vmatpush.msra.mxu0 0.0
        %1015 = vmatpush.msra.mxu0 0.0
        %1016 = vmatpush.msra.mxu0 0.0
        %1017 = vmatpush.msra.mxu0 0.0
        %1018 = vmatpush.msra.mxu0 0.0
        %1019 = vmatpush.msra.mxu0 0.0
        %1020 = vmatpush.msra.mxu0 0.0
        %1021 = vmatpush.msra.mxu0 %v898
        %1022 = vmatpush.msra.mxu0 %v897
        %1023 = vmatmul.f32.gmra.mxu0 %v1005
        %v1024 = vpop.f32.mrf.mxu0
        %v1025 = vadd.f32 0.0, %v1024
        %1026 = vdwg.mxu0
        %v1028 = vsel %vm594, %v841, 0
        %1030 = vmatpush.msra.mxu0 0.0
        %1031 = vmatpush.msra.mxu0 0.0
        %1032 = vmatpush.msra.mxu0 0.0
        %1033 = vmatpush.msra.mxu0 0.0
        %1034 = vmatpush.msra.mxu0 0.0
        %1035 = vmatpush.msra.mxu0 0.0
        %1036 = vmatpush.msra.mxu0 0.0
        %1037 = vmatpush.msra.mxu0 0.0
        %1038 = vmatpush.msra.mxu0 0.0
        %1039 = vmatpush.msra.mxu0 0.0
        %1040 = vmatpush.msra.mxu0 0.0
        %1041 = vmatpush.msra.mxu0 0.0
        %1042 = vmatpush.msra.mxu0 %v385
        %1043 = vmatpush.msra.mxu0 %v383
        %1044 = vmatpush.msra.mxu0 %v381
        %1045 = vmatpush.msra.mxu0 %v379
        %1046 = vmatmul.f32.gmra.mxu0 %v1028
        %v1047 = vpop.f32.mrf.mxu0
        %v1048 = vadd.f32 0.0, %v1047
        %1049 = vdwg.mxu0
        %1050 = vmatpush.msra.mxu0 0.0
        %1051 = vmatpush.msra.mxu0 0.0
        %1052 = vmatpush.msra.mxu0 0.0
        %1053 = vmatpush.msra.mxu0 0.0
        %1054 = vmatpush.msra.mxu0 0.0
        %1055 = vmatpush.msra.mxu0 0.0
        %1056 = vmatpush.msra.mxu0 0.0
        %1057 = vmatpush.msra.mxu0 0.0
        %1058 = vmatpush.msra.mxu0 0.0
        %1059 = vmatpush.msra.mxu0 0.0
        %1060 = vmatpush.msra.mxu0 0.0
        %1061 = vmatpush.msra.mxu0 0.0
        %1062 = vmatpush.msra.mxu0 %v386
        %1063 = vmatpush.msra.mxu0 %v384
        %1064 = vmatpush.msra.mxu0 %v382
        %1065 = vmatpush.msra.mxu0 %v380
        %1066 = vmatmul.f32.gmra.mxu0 %v1028
        %v1067 = vpop.f32.mrf.mxu0
        %v1068 = vadd.f32 0.0, %v1067
        %1069 = vdwg.mxu0
        %1071 = vrot.lane.b32.xlu0 %v970, 120
        %v1072 = vpop.permute.xlu0 %1071
        %1076 = vrot.lane.b32.xlu0 %v1048, 96
        %v1077 = vpop.permute.xlu0 %1076
        %1078 = vrot.lane.b32.xlu0 %v1068, 96
        %v1079 = vpop.permute.xlu0 %1078
        %v1080 = vsel %vm648, %v1077, %v1079
        %v1083 = vsel %vm594, %v1072, %v1080
        %v1084 = vsel %vm407, %v970, 0
        %1086 = vmatpush.msra.mxu0 0.0
        %1087 = vmatpush.msra.mxu0 0.0
        %1088 = vmatpush.msra.mxu0 0.0
        %1089 = vmatpush.msra.mxu0 0.0
        %1090 = vmatpush.msra.mxu0 0.0
        %1091 = vmatpush.msra.mxu0 0.0
        %1092 = vmatpush.msra.mxu0 0.0
        %1093 = vmatpush.msra.mxu0 0.0
        %1094 = vmatpush.msra.mxu0 0.0
        %1095 = vmatpush.msra.mxu0 0.0
        %1096 = vmatpush.msra.mxu0 0.0
        %1097 = vmatpush.msra.mxu0 0.0
        %1098 = vmatpush.msra.mxu0 0.0
        %1099 = vmatpush.msra.mxu0 0.0
        %1100 = vmatpush.msra.mxu0 0.0
        %1101 = vmatpush.msra.mxu0 %v1083
        %1102 = vmatmul.f32.gmra.mxu0 %v1084
        %v1103 = vpop.f32.mrf.mxu0
        %v1104 = vadd.f32 0.0, %v1103
        %1105 = vdwg.mxu0
        %1106 = vmatpush.msra.mxu0 0.0
        %1107 = vmatpush.msra.mxu0 0.0
        %1108 = vmatpush.msra.mxu0 0.0
        %1109 = vmatpush.msra.mxu0 0.0
        %1110 = vmatpush.msra.mxu0 0.0
        %1111 = vmatpush.msra.mxu0 0.0
        %1112 = vmatpush.msra.mxu0 0.0
        %1113 = vmatpush.msra.mxu0 0.0
        %1114 = vmatpush.msra.mxu0 0.0
        %1115 = vmatpush.msra.mxu0 0.0
        %1116 = vmatpush.msra.mxu0 0.0
        %1117 = vmatpush.msra.mxu0 0.0
        %1118 = vmatpush.msra.mxu0 0.0
        %1119 = vmatpush.msra.mxu0 0.0
        %1120 = vmatpush.msra.mxu0 0.0
        %1121 = vmatpush.msra.mxu0 %v1079
        %1122 = vmatmul.f32.gmra.mxu0 %v1084
        %v1123 = vpop.f32.mrf.mxu0
        %v1124 = vadd.f32 0.0, %v1123
        %1125 = vdwg.mxu0
        %v1127 = vsel %vm594, %v1104, 0
        %1129 = vmatpush.msra.mxu0 0.0
        %1130 = vmatpush.msra.mxu0 0.0
        %1131 = vmatpush.msra.mxu0 0.0
        %1132 = vmatpush.msra.mxu0 0.0
        %1133 = vmatpush.msra.mxu0 0.0
        %1134 = vmatpush.msra.mxu0 0.0
        %1135 = vmatpush.msra.mxu0 0.0
        %1136 = vmatpush.msra.mxu0 0.0
        %1137 = vmatpush.msra.mxu0 0.0
        %1138 = vmatpush.msra.mxu0 0.0
        %1139 = vmatpush.msra.mxu0 0.0
        %1140 = vmatpush.msra.mxu0 0.0
        %1141 = vmatpush.msra.mxu0 %v390
        %1142 = vmatpush.msra.mxu0 %v389
        %1143 = vmatpush.msra.mxu0 %v388
        %1144 = vmatpush.msra.mxu0 %v387
        %1145 = vmatmul.f32.gmra.mxu0 %v1127
        %v1146 = vpop.f32.mrf.mxu0
        %v1147 = vadd.f32 0.0, %v1146
        %1148 = vdwg.mxu0
        %1149 = vrot.lane.b32.xlu0 %v1104, 96
        %v1150 = vpop.permute.xlu0 %1149
        %v1153 = vsel %vm407, %v1025, 0
        %1155 = vmatpush.msra.mxu0 0.0
        %1156 = vmatpush.msra.mxu0 0.0
        %1157 = vmatpush.msra.mxu0 0.0
        %1158 = vmatpush.msra.mxu0 0.0
        %1159 = vmatpush.msra.mxu0 0.0
        %1160 = vmatpush.msra.mxu0 0.0
        %1161 = vmatpush.msra.mxu0 0.0
        %1162 = vmatpush.msra.mxu0 0.0
        %1163 = vmatpush.msra.mxu0 0.0
        %1164 = vmatpush.msra.mxu0 0.0
        %1165 = vmatpush.msra.mxu0 0.0
        %1166 = vmatpush.msra.mxu0 0.0
        %1167 = vmatpush.msra.mxu0 0.0
        %1168 = vmatpush.msra.mxu0 0.0
        %1169 = vmatpush.msra.mxu0 0.0
        %1170 = vmatpush.msra.mxu0 %v1150
        %1171 = vmatmul.f32.gmra.mxu0 %v1153
        %v1172 = vpop.f32.mrf.mxu0
        %v1173 = vadd.f32 0.0, %v1172
        %1174 = vdwg.mxu0
        %v1175 = vsel %vm407, %v897, 0.0
        %v1176 = vsel %vm407, %v898, 0.0
        %v1177 = vadd.f32 %v1175, %v1176
        %v1178 = vrot.slane %v1177, 4
        %v1179 = vadd.f32 %v1177, %v1178
        %v1180 = vrot.slane %v1179, 2
        %v1181 = vadd.f32 %v1179, %v1180
        %v1182 = vrot.slane %v1181, 1
        %v1183 = vadd.f32 %v1181, %v1182
        %1185 = vrot.lane.b32.xlu0 %v1104, 32
        %v1186 = vpop.permute.xlu0 %1185
        %1187 = vrot.lane.b32.xlu0 %v1124, 32
        %v1188 = vpop.permute.xlu0 %1187
        %v1189 = vsel %vm594, %v1186, %v1188
        %v1192 = vsel %vm407, %v1183, 0
        %1194 = vmatpush.msra.mxu0 0.0
        %1195 = vmatpush.msra.mxu0 0.0
        %1196 = vmatpush.msra.mxu0 0.0
        %1197 = vmatpush.msra.mxu0 0.0
        %1198 = vmatpush.msra.mxu0 0.0
        %1199 = vmatpush.msra.mxu0 0.0
        %1200 = vmatpush.msra.mxu0 0.0
        %1201 = vmatpush.msra.mxu0 0.0
        %1202 = vmatpush.msra.mxu0 0.0
        %1203 = vmatpush.msra.mxu0 0.0
        %1204 = vmatpush.msra.mxu0 0.0
        %1205 = vmatpush.msra.mxu0 0.0
        %1206 = vmatpush.msra.mxu0 0.0
        %1207 = vmatpush.msra.mxu0 0.0
        %1208 = vmatpush.msra.mxu0 0.0
        %1209 = vmatpush.msra.mxu0 %v1189
        %1210 = vmatmul.f32.gmra.mxu0 %v1192
        %v1211 = vpop.f32.mrf.mxu0
        %v1212 = vadd.f32 0.0, %v1211
        %1213 = vdwg.mxu0
        %v1214 = vsel %vm783, %v1147, 0.0
        %v1215 = vrot.slane %v1214, 4
        %v1216 = vadd.f32 %v1214, %v1215
        %v1217 = vrot.slane %v1216, 2
        %v1218 = vadd.f32 %v1216, %v1217
        %v1219 = vrot.slane %v1218, 1
        %v1220 = vadd.f32 %v1218, %v1219
        %v1221 = vadd.f32 %v1048, %v1147
        %v1222 = vadd.f32 %v1221, %v1173
        %v1223 = vperm.slane %v1212, 0
        %v1224 = vadd.f32 %v1222, %v1223
        %1226 = vrot.lane.b32.xlu0 %v1220, 64
        %v1227 = vpop.permute.xlu0 %1226
        %v1229 = vadd.f32 %v1224, %v1227
        %v1230 = vadd.f32 %v1229, %v800
        %v1231 = vmax.f32 %v1230, 0.0
        %v1233 = vsel %vm804, %v1231, 0
        %1235 = vmatpush.msra.mxu0 0.0
        %1236 = vmatpush.msra.mxu0 0.0
        %1237 = vmatpush.msra.mxu0 0.0
        %1238 = vmatpush.msra.mxu0 0.0
        %1239 = vmatpush.msra.mxu0 0.0
        %1240 = vmatpush.msra.mxu0 0.0
        %1241 = vmatpush.msra.mxu0 0.0
        %1242 = vmatpush.msra.mxu0 0.0
        %1243 = vmatpush.msra.mxu0 %v398
        %1244 = vmatpush.msra.mxu0 %v397
        %1245 = vmatpush.msra.mxu0 %v396
        %1246 = vmatpush.msra.mxu0 %v395
        %1247 = vmatpush.msra.mxu0 %v394
        %1248 = vmatpush.msra.mxu0 %v393
        %1249 = vmatpush.msra.mxu0 %v392
        %1250 = vmatpush.msra.mxu0 %v391
        %1251 = vmatmul.f32.gmra.mxu0 %v1233
        %v1252 = vpop.f32.mrf.mxu0
        %v1253 = vadd.f32 %v803, %v1252
        %1254 = vdwg.mxu0
        %v1255 = vmax.f32 %v1253, 0.0
        %v1256 = vmul.f32 %v1255, %v829
        %v1257 = vsel %vm804, %v1256, 0.0
        %1258 = vadd.xlane.f32.xlu0 %v1257
        %v1259 = vpop.xlane.xlu0 %1258
        %s1260 = scalar_lea.vmem %s364, 32
        %v1261 = vld [vmem:[%s1260] sm:$0xff]
        %v1262 = vld [vmem:[%s1260 + $0x8] sm:$0xff]
        %s1263 = scalar_lea.vmem %s371, 32
        %v1264 = vld [vmem:[%s1263] sm:$0xff]
        %v1265 = vld [vmem:[%s1263 + $0x8] sm:$0xff]
        %s1266 = scalar_lea.vmem %s377, 16
        %v1267 = vld [vmem:[%s1266] sm:$0xff]
        %v1268 = vsel %vm407, %v1261, 0.0
        %1269 = vadd.xlane.f32.xlu0 %v1268
        %v1270 = vpop.xlane.xlu0 %1269
        %v1271 = vsel %vm407, %v1262, 0.0
        %1272 = vadd.xlane.f32.xlu0 %v1271
        %v1273 = vpop.xlane.xlu0 %1272
        %v1274 = vrcp.pop %v1270
        %v1275 = vmul.f32 %v1270, %v1274
        %v1276 = vsub.f32 1.0, %v1275
        %v1277 = vmul.f32 %v1274, %v1276
        %v1278 = vadd.f32 %v1274, %v1277
        %vm1279 = vweird.f32 %v1270
        %vm1280 = vweird.f32 %v1274
        %vm1281 = vmor %vm1279, %vm1280
        %v1282 = vsel %vm1281, %v1274, %v1278
        %v1283 = vand.u32 2147483647, %v1270
        %vm1284 = vcmp.eq.f32.partialorder %v1283, 8.507059e+37
        %v1285 = vand.u32 %v1270, 2147483648
        %v1286 = vor.u32 1.1754944e-38, %v1285
        %v1287 = vsel %vm1284, %v1286, %v1282
        %v1288 = vrcp.pop %v1273
        %v1289 = vmul.f32 %v1273, %v1288
        %v1290 = vsub.f32 1.0, %v1289
        %v1291 = vmul.f32 %v1288, %v1290
        %v1292 = vadd.f32 %v1288, %v1291
        %vm1293 = vweird.f32 %v1273
        %vm1294 = vweird.f32 %v1288
        %vm1295 = vmor %vm1293, %vm1294
        %v1296 = vsel %vm1295, %v1288, %v1292
        %v1297 = vand.u32 2147483647, %v1273
        %vm1298 = vcmp.eq.f32.partialorder %v1297, 8.507059e+37
        %v1299 = vand.u32 %v1273, 2147483648
        %v1300 = vor.u32 1.1754944e-38, %v1299
        %v1301 = vsel %vm1298, %v1300, %v1296
        %v1302 = vadd.f32 %v1268, %v1271
        %v1303 = vrot.slane %v1302, 4
        %v1304 = vadd.f32 %v1302, %v1303
        %v1305 = vrot.slane %v1304, 2
        %v1306 = vadd.f32 %v1304, %v1305
        %v1307 = vrot.slane %v1306, 1
        %v1308 = vadd.f32 %v1306, %v1307
        %v1309 = vrcp.pop %v1308
        %v1310 = vmul.f32 %v1308, %v1309
        %v1311 = vsub.f32 1.0, %v1310
        %v1312 = vmul.f32 %v1309, %v1311
        %v1313 = vadd.f32 %v1309, %v1312
        %vm1314 = vweird.f32 %v1308
        %vm1315 = vweird.f32 %v1309
        %vm1316 = vmor %vm1314, %vm1315
        %v1317 = vsel %vm1316, %v1309, %v1313
        %v1318 = vand.u32 2147483647, %v1308
        %vm1319 = vcmp.eq.f32.partialorder %v1318, 8.507059e+37
        %v1320 = vand.u32 %v1308, 2147483648
        %v1321 = vor.u32 1.1754944e-38, %v1320
        %v1322 = vsel %vm1319, %v1321, %v1317
        %v1323 = vmul.f32 %v1261, %v1287
        %v1324 = vmul.f32 %v1262, %v1301
        %v1325 = vmul.f32 %v1261, %v1322
        %v1326 = vmul.f32 %v1262, %v1322
        %vm1327 = vcmp.gt.f32.partialorder %v1261, 0.0
        %vm1328 = vcmp.gt.f32.partialorder %v1262, 0.0
        %v1329 = vsel %vm1327, 1, 0
        %v1330 = vsel %vm1328, 1, 0
        %v1331 = vcvt.s32.f32 %v1329
        %v1332 = vcvt.s32.f32 %v1330
        %1335 = vrot.lane.b32.xlu0 %v1264, 8
        %v1336 = vpop.permute.xlu0 %1335
        %1337 = vrot.lane.b32.xlu0 %v1265, 8
        %v1338 = vpop.permute.xlu0 %1337
        %v1341 = vsel %vm407, %v1323, %v1336
        %v1342 = vsel %vm407, %v1324, %v1338
        %1343 = vxpose.xlu0.b32.start [1/16] %v1325, 128
        %1344 = vxpose.xlu0.b32.cont [2/16] %v1326, 128
        %1345 = vxpose.xlu0.b32.cont [3/16] 0.0, 128
        %1346 = vxpose.xlu0.b32.cont [4/16] 0.0, 128
        %1347 = vxpose.xlu0.b32.cont [5/16] 0.0, 128
        %1348 = vxpose.xlu0.b32.cont [6/16] 0.0, 128
        %1349 = vxpose.xlu0.b32.cont [7/16] 0.0, 128
        %1350 = vxpose.xlu0.b32.cont [8/16] 0.0, 128
        %1351 = vxpose.xlu0.b32.cont [9/16] 0.0, 128
        %1352 = vxpose.xlu0.b32.cont [10/16] 0.0, 128
        %1353 = vxpose.xlu0.b32.cont [11/16] 0.0, 128
        %1354 = vxpose.xlu0.b32.cont [12/16] 0.0, 128
        %1355 = vxpose.xlu0.b32.cont [13/16] 0.0, 128
        %1356 = vxpose.xlu0.b32.cont [14/16] 0.0, 128
        %1357 = vxpose.xlu0.b32.cont [15/16] 0.0, 128
        %1358 = vxpose.xlu0.b32.end [16/16] 0.0, 128
        %v1359 = vpop.trf.xlu0
        %v1360 = vpop.trf.xlu0
        %v1361 = vpop.trf.xlu0
        %v1362 = vpop.trf.xlu0
        %v1363 = vpop.trf.xlu0
        %v1364 = vpop.trf.xlu0
        %v1365 = vpop.trf.xlu0
        %v1366 = vpop.trf.xlu0
        %v1367 = vpop.trf.xlu0
        %v1368 = vpop.trf.xlu0
        %v1369 = vpop.trf.xlu0
        %v1370 = vpop.trf.xlu0
        %v1371 = vpop.trf.xlu0
        %v1372 = vpop.trf.xlu0
        %v1373 = vpop.trf.xlu0
        %v1374 = vpop.trf.xlu0
        %v1376 = vsel %vm515, %v1359, 0
        %1378 = vmatpush.msra.mxu0 0.0
        %1379 = vmatpush.msra.mxu0 0.0
        %1380 = vmatpush.msra.mxu0 0.0
        %1381 = vmatpush.msra.mxu0 0.0
        %1382 = vmatpush.msra.mxu0 0.0
        %1383 = vmatpush.msra.mxu0 0.0
        %1384 = vmatpush.msra.mxu0 0.0
        %1385 = vmatpush.msra.mxu0 0.0
        %1386 = vmatpush.msra.mxu0 0.0
        %1387 = vmatpush.msra.mxu0 0.0
        %1388 = vmatpush.msra.mxu0 0.0
        %1389 = vmatpush.msra.mxu0 0.0
        %1390 = vmatpush.msra.mxu0 0.0
        %1391 = vmatpush.msra.mxu0 0.0
        %1392 = vmatpush.msra.mxu0 %v1342
        %1393 = vmatpush.msra.mxu0 %v1341
        %1394 = vmatmul.f32.gmra.mxu0 %v1376
        %v1395 = vpop.f32.mrf.mxu0
        %v1396 = vadd.f32 0.0, %v1395
        %1397 = vdwg.mxu0
        %1398 = vxpose.xlu0.b32.start [1/16] %v1331, 128
        %1399 = vxpose.xlu0.b32.cont [2/16] %v1332, 128
        %1400 = vxpose.xlu0.b32.cont [3/16] 0.0, 128
        %1401 = vxpose.xlu0.b32.cont [4/16] 0.0, 128
        %1402 = vxpose.xlu0.b32.cont [5/16] 0.0, 128
        %1403 = vxpose.xlu0.b32.cont [6/16] 0.0, 128
        %1404 = vxpose.xlu0.b32.cont [7/16] 0.0, 128
        %1405 = vxpose.xlu0.b32.cont [8/16] 0.0, 128
        %1406 = vxpose.xlu0.b32.cont [9/16] 0.0, 128
        %1407 = vxpose.xlu0.b32.cont [10/16] 0.0, 128
        %1408 = vxpose.xlu0.b32.cont [11/16] 0.0, 128
        %1409 = vxpose.xlu0.b32.cont [12/16] 0.0, 128
        %1410 = vxpose.xlu0.b32.cont [13/16] 0.0, 128
        %1411 = vxpose.xlu0.b32.cont [14/16] 0.0, 128
        %1412 = vxpose.xlu0.b32.cont [15/16] 0.0, 128
        %1413 = vxpose.xlu0.b32.end [16/16] 0.0, 128
        %v1414 = vpop.trf.xlu0
        %v1415 = vpop.trf.xlu0
        %v1416 = vpop.trf.xlu0
        %v1417 = vpop.trf.xlu0
        %v1418 = vpop.trf.xlu0
        %v1419 = vpop.trf.xlu0
        %v1420 = vpop.trf.xlu0
        %v1421 = vpop.trf.xlu0
        %v1422 = vpop.trf.xlu0
        %v1423 = vpop.trf.xlu0
        %v1424 = vpop.trf.xlu0
        %v1425 = vpop.trf.xlu0
        %v1426 = vpop.trf.xlu0
        %v1427 = vpop.trf.xlu0
        %v1428 = vpop.trf.xlu0
        %v1429 = vpop.trf.xlu0
        %v1431 = vsel %vm515, %v1414, 0
        %1433 = vmatpush.msra.mxu0 0.0
        %1434 = vmatpush.msra.mxu0 0.0
        %1435 = vmatpush.msra.mxu0 0.0
        %1436 = vmatpush.msra.mxu0 0.0
        %1437 = vmatpush.msra.mxu0 0.0
        %1438 = vmatpush.msra.mxu0 0.0
        %1439 = vmatpush.msra.mxu0 0.0
        %1440 = vmatpush.msra.mxu0 0.0
        %1441 = vmatpush.msra.mxu0 0.0
        %1442 = vmatpush.msra.mxu0 0.0
        %1443 = vmatpush.msra.mxu0 0.0
        %1444 = vmatpush.msra.mxu0 0.0
        %1445 = vmatpush.msra.mxu0 0.0
        %1446 = vmatpush.msra.mxu0 0.0
        %1447 = vmatpush.msra.mxu0 %v1324
        %1448 = vmatpush.msra.mxu0 %v1323
        %1449 = vmatmul.f32.gmra.mxu0 %v1431
        %v1450 = vpop.f32.mrf.mxu0
        %v1451 = vadd.f32 0.0, %v1450
        %1452 = vdwg.mxu0
        %v1454 = vsel %vm594, %v1267, 0
        %1456 = vmatpush.msra.mxu0 0.0
        %1457 = vmatpush.msra.mxu0 0.0
        %1458 = vmatpush.msra.mxu0 0.0
        %1459 = vmatpush.msra.mxu0 0.0
        %1460 = vmatpush.msra.mxu0 0.0
        %1461 = vmatpush.msra.mxu0 0.0
        %1462 = vmatpush.msra.mxu0 0.0
        %1463 = vmatpush.msra.mxu0 0.0
        %1464 = vmatpush.msra.mxu0 0.0
        %1465 = vmatpush.msra.mxu0 0.0
        %1466 = vmatpush.msra.mxu0 0.0
        %1467 = vmatpush.msra.mxu0 0.0
        %1468 = vmatpush.msra.mxu0 %v385
        %1469 = vmatpush.msra.mxu0 %v383
        %1470 = vmatpush.msra.mxu0 %v381
        %1471 = vmatpush.msra.mxu0 %v379
        %1472 = vmatmul.f32.gmra.mxu0 %v1454
        %v1473 = vpop.f32.mrf.mxu0
        %v1474 = vadd.f32 0.0, %v1473
        %1475 = vdwg.mxu0
        %1476 = vmatpush.msra.mxu0 0.0
        %1477 = vmatpush.msra.mxu0 0.0
        %1478 = vmatpush.msra.mxu0 0.0
        %1479 = vmatpush.msra.mxu0 0.0
        %1480 = vmatpush.msra.mxu0 0.0
        %1481 = vmatpush.msra.mxu0 0.0
        %1482 = vmatpush.msra.mxu0 0.0
        %1483 = vmatpush.msra.mxu0 0.0
        %1484 = vmatpush.msra.mxu0 0.0
        %1485 = vmatpush.msra.mxu0 0.0
        %1486 = vmatpush.msra.mxu0 0.0
        %1487 = vmatpush.msra.mxu0 0.0
        %1488 = vmatpush.msra.mxu0 %v386
        %1489 = vmatpush.msra.mxu0 %v384
        %1490 = vmatpush.msra.mxu0 %v382
        %1491 = vmatpush.msra.mxu0 %v380
        %1492 = vmatmul.f32.gmra.mxu0 %v1454
        %v1493 = vpop.f32.mrf.mxu0
        %v1494 = vadd.f32 0.0, %v1493
        %1495 = vdwg.mxu0
        %1497 = vrot.lane.b32.xlu0 %v1396, 120
        %v1498 = vpop.permute.xlu0 %1497
        %1502 = vrot.lane.b32.xlu0 %v1474, 96
        %v1503 = vpop.permute.xlu0 %1502
        %1504 = vrot.lane.b32.xlu0 %v1494, 96
        %v1505 = vpop.permute.xlu0 %1504
        %v1506 = vsel %vm648, %v1503, %v1505
        %v1509 = vsel %vm594, %v1498, %v1506
        %v1510 = vsel %vm407, %v1396, 0
        %1512 = vmatpush.msra.mxu0 0.0
        %1513 = vmatpush.msra.mxu0 0.0
        %1514 = vmatpush.msra.mxu0 0.0
        %1515 = vmatpush.msra.mxu0 0.0
        %1516 = vmatpush.msra.mxu0 0.0
        %1517 = vmatpush.msra.mxu0 0.0
        %1518 = vmatpush.msra.mxu0 0.0
        %1519 = vmatpush.msra.mxu0 0.0
        %1520 = vmatpush.msra.mxu0 0.0
        %1521 = vmatpush.msra.mxu0 0.0
        %1522 = vmatpush.msra.mxu0 0.0
        %1523 = vmatpush.msra.mxu0 0.0
        %1524 = vmatpush.msra.mxu0 0.0
        %1525 = vmatpush.msra.mxu0 0.0
        %1526 = vmatpush.msra.mxu0 0.0
        %1527 = vmatpush.msra.mxu0 %v1509
        %1528 = vmatmul.f32.gmra.mxu0 %v1510
        %v1529 = vpop.f32.mrf.mxu0
        %v1530 = vadd.f32 0.0, %v1529
        %1531 = vdwg.mxu0
        %1532 = vmatpush.msra.mxu0 0.0
        %1533 = vmatpush.msra.mxu0 0.0
        %1534 = vmatpush.msra.mxu0 0.0
        %1535 = vmatpush.msra.mxu0 0.0
        %1536 = vmatpush.msra.mxu0 0.0
        %1537 = vmatpush.msra.mxu0 0.0
        %1538 = vmatpush.msra.mxu0 0.0
        %1539 = vmatpush.msra.mxu0 0.0
        %1540 = vmatpush.msra.mxu0 0.0
        %1541 = vmatpush.msra.mxu0 0.0
        %1542 = vmatpush.msra.mxu0 0.0
        %1543 = vmatpush.msra.mxu0 0.0
        %1544 = vmatpush.msra.mxu0 0.0
        %1545 = vmatpush.msra.mxu0 0.0
        %1546 = vmatpush.msra.mxu0 0.0
        %1547 = vmatpush.msra.mxu0 %v1505
        %1548 = vmatmul.f32.gmra.mxu0 %v1510
        %v1549 = vpop.f32.mrf.mxu0
        %v1550 = vadd.f32 0.0, %v1549
        %1551 = vdwg.mxu0
        %v1553 = vsel %vm594, %v1530, 0
        %1555 = vmatpush.msra.mxu0 0.0
        %1556 = vmatpush.msra.mxu0 0.0
        %1557 = vmatpush.msra.mxu0 0.0
        %1558 = vmatpush.msra.mxu0 0.0
        %1559 = vmatpush.msra.mxu0 0.0
        %1560 = vmatpush.msra.mxu0 0.0
        %1561 = vmatpush.msra.mxu0 0.0
        %1562 = vmatpush.msra.mxu0 0.0
        %1563 = vmatpush.msra.mxu0 0.0
        %1564 = vmatpush.msra.mxu0 0.0
        %1565 = vmatpush.msra.mxu0 0.0
        %1566 = vmatpush.msra.mxu0 0.0
        %1567 = vmatpush.msra.mxu0 %v390
        %1568 = vmatpush.msra.mxu0 %v389
        %1569 = vmatpush.msra.mxu0 %v388
        %1570 = vmatpush.msra.mxu0 %v387
        %1571 = vmatmul.f32.gmra.mxu0 %v1553
        %v1572 = vpop.f32.mrf.mxu0
        %v1573 = vadd.f32 0.0, %v1572
        %1574 = vdwg.mxu0
        %1575 = vrot.lane.b32.xlu0 %v1530, 96
        %v1576 = vpop.permute.xlu0 %1575
        %v1579 = vsel %vm407, %v1451, 0
        %1581 = vmatpush.msra.mxu0 0.0
        %1582 = vmatpush.msra.mxu0 0.0
        %1583 = vmatpush.msra.mxu0 0.0
        %1584 = vmatpush.msra.mxu0 0.0
        %1585 = vmatpush.msra.mxu0 0.0
        %1586 = vmatpush.msra.mxu0 0.0
        %1587 = vmatpush.msra.mxu0 0.0
        %1588 = vmatpush.msra.mxu0 0.0
        %1589 = vmatpush.msra.mxu0 0.0
        %1590 = vmatpush.msra.mxu0 0.0
        %1591 = vmatpush.msra.mxu0 0.0
        %1592 = vmatpush.msra.mxu0 0.0
        %1593 = vmatpush.msra.mxu0 0.0
        %1594 = vmatpush.msra.mxu0 0.0
        %1595 = vmatpush.msra.mxu0 0.0
        %1596 = vmatpush.msra.mxu0 %v1576
        %1597 = vmatmul.f32.gmra.mxu0 %v1579
        %v1598 = vpop.f32.mrf.mxu0
        %v1599 = vadd.f32 0.0, %v1598
        %1600 = vdwg.mxu0
        %v1601 = vsel %vm407, %v1323, 0.0
        %v1602 = vsel %vm407, %v1324, 0.0
        %v1603 = vadd.f32 %v1601, %v1602
        %v1604 = vrot.slane %v1603, 4
        %v1605 = vadd.f32 %v1603, %v1604
        %v1606 = vrot.slane %v1605, 2
        %v1607 = vadd.f32 %v1605, %v1606
        %v1608 = vrot.slane %v1607, 1
        %v1609 = vadd.f32 %v1607, %v1608
        %1611 = vrot.lane.b32.xlu0 %v1530, 32
        %v1612 = vpop.permute.xlu0 %1611
        %1613 = vrot.lane.b32.xlu0 %v1550, 32
        %v1614 = vpop.permute.xlu0 %1613
        %v1615 = vsel %vm594, %v1612, %v1614
        %v1618 = vsel %vm407, %v1609, 0
        %1620 = vmatpush.msra.mxu0 0.0
        %1621 = vmatpush.msra.mxu0 0.0
        %1622 = vmatpush.msra.mxu0 0.0
        %1623 = vmatpush.msra.mxu0 0.0
        %1624 = vmatpush.msra.mxu0 0.0
        %1625 = vmatpush.msra.mxu0 0.0
        %1626 = vmatpush.msra.mxu0 0.0
        %1627 = vmatpush.msra.mxu0 0.0
        %1628 = vmatpush.msra.mxu0 0.0
        %1629 = vmatpush.msra.mxu0 0.0
        %1630 = vmatpush.msra.mxu0 0.0
        %1631 = vmatpush.msra.mxu0 0.0
        %1632 = vmatpush.msra.mxu0 0.0
        %1633 = vmatpush.msra.mxu0 0.0
        %1634 = vmatpush.msra.mxu0 0.0
        %1635 = vmatpush.msra.mxu0 %v1615
        %1636 = vmatmul.f32.gmra.mxu0 %v1618
        %v1637 = vpop.f32.mrf.mxu0
        %v1638 = vadd.f32 0.0, %v1637
        %1639 = vdwg.mxu0
        %v1640 = vsel %vm783, %v1573, 0.0
        %v1641 = vrot.slane %v1640, 4
        %v1642 = vadd.f32 %v1640, %v1641
        %v1643 = vrot.slane %v1642, 2
        %v1644 = vadd.f32 %v1642, %v1643
        %v1645 = vrot.slane %v1644, 1
        %v1646 = vadd.f32 %v1644, %v1645
        %v1647 = vadd.f32 %v1474, %v1573
        %v1648 = vadd.f32 %v1647, %v1599
        %v1649 = vperm.slane %v1638, 0
        %v1650 = vadd.f32 %v1648, %v1649
        %1652 = vrot.lane.b32.xlu0 %v1646, 64
        %v1653 = vpop.permute.xlu0 %1652
        %v1655 = vadd.f32 %v1650, %v1653
        %v1656 = vadd.f32 %v1655, %v800
        %v1657 = vmax.f32 %v1656, 0.0
        %v1659 = vsel %vm804, %v1657, 0
        %1661 = vmatpush.msra.mxu0 0.0
        %1662 = vmatpush.msra.mxu0 0.0
        %1663 = vmatpush.msra.mxu0 0.0
        %1664 = vmatpush.msra.mxu0 0.0
        %1665 = vmatpush.msra.mxu0 0.0
        %1666 = vmatpush.msra.mxu0 0.0
        %1667 = vmatpush.msra.mxu0 0.0
        %1668 = vmatpush.msra.mxu0 0.0
        %1669 = vmatpush.msra.mxu0 %v398
        %1670 = vmatpush.msra.mxu0 %v397
        %1671 = vmatpush.msra.mxu0 %v396
        %1672 = vmatpush.msra.mxu0 %v395
        %1673 = vmatpush.msra.mxu0 %v394
        %1674 = vmatpush.msra.mxu0 %v393
        %1675 = vmatpush.msra.mxu0 %v392
        %1676 = vmatpush.msra.mxu0 %v391
        %1677 = vmatmul.f32.gmra.mxu0 %v1659
        %v1678 = vpop.f32.mrf.mxu0
        %v1679 = vadd.f32 %v803, %v1678
        %1680 = vdwg.mxu0
        %v1681 = vmax.f32 %v1679, 0.0
        %v1682 = vmul.f32 %v1681, %v829
        %v1683 = vsel %vm804, %v1682, 0.0
        %1684 = vadd.xlane.f32.xlu0 %v1683
        %v1685 = vpop.xlane.xlu0 %1684
        %s1686 = scalar_lea.vmem %s364, 48
        %v1687 = vld [vmem:[%s1686] sm:$0xff]
        %v1688 = vld [vmem:[%s1686 + $0x8] sm:$0xff]
        %s1689 = scalar_lea.vmem %s371, 48
        %v1690 = vld [vmem:[%s1689] sm:$0xff]
        %v1691 = vld [vmem:[%s1689 + $0x8] sm:$0xff]
        %s1692 = scalar_lea.vmem %s377, 24
        %v1693 = vld [vmem:[%s1692] sm:$0xff]
        %v1694 = vsel %vm407, %v1687, 0.0
        %1695 = vadd.xlane.f32.xlu0 %v1694
        %v1696 = vpop.xlane.xlu0 %1695
        %v1697 = vsel %vm407, %v1688, 0.0
        %1698 = vadd.xlane.f32.xlu0 %v1697
        %v1699 = vpop.xlane.xlu0 %1698
        %v1700 = vrcp.pop %v1696
        %v1701 = vmul.f32 %v1696, %v1700
        %v1702 = vsub.f32 1.0, %v1701
        %v1703 = vmul.f32 %v1700, %v1702
        %v1704 = vadd.f32 %v1700, %v1703
        %vm1705 = vweird.f32 %v1696
        %vm1706 = vweird.f32 %v1700
        %vm1707 = vmor %vm1705, %vm1706
        %v1708 = vsel %vm1707, %v1700, %v1704
        %v1709 = vand.u32 2147483647, %v1696
        %vm1710 = vcmp.eq.f32.partialorder %v1709, 8.507059e+37
        %v1711 = vand.u32 %v1696, 2147483648
        %v1712 = vor.u32 1.1754944e-38, %v1711
        %v1713 = vsel %vm1710, %v1712, %v1708
        %v1714 = vrcp.pop %v1699
        %v1715 = vmul.f32 %v1699, %v1714
        %v1716 = vsub.f32 1.0, %v1715
        %v1717 = vmul.f32 %v1714, %v1716
        %v1718 = vadd.f32 %v1714, %v1717
        %vm1719 = vweird.f32 %v1699
        %vm1720 = vweird.f32 %v1714
        %vm1721 = vmor %vm1719, %vm1720
        %v1722 = vsel %vm1721, %v1714, %v1718
        %v1723 = vand.u32 2147483647, %v1699
        %vm1724 = vcmp.eq.f32.partialorder %v1723, 8.507059e+37
        %v1725 = vand.u32 %v1699, 2147483648
        %v1726 = vor.u32 1.1754944e-38, %v1725
        %v1727 = vsel %vm1724, %v1726, %v1722
        %v1728 = vadd.f32 %v1694, %v1697
        %v1729 = vrot.slane %v1728, 4
        %v1730 = vadd.f32 %v1728, %v1729
        %v1731 = vrot.slane %v1730, 2
        %v1732 = vadd.f32 %v1730, %v1731
        %v1733 = vrot.slane %v1732, 1
        %v1734 = vadd.f32 %v1732, %v1733
        %v1735 = vrcp.pop %v1734
        %v1736 = vmul.f32 %v1734, %v1735
        %v1737 = vsub.f32 1.0, %v1736
        %v1738 = vmul.f32 %v1735, %v1737
        %v1739 = vadd.f32 %v1735, %v1738
        %vm1740 = vweird.f32 %v1734
        %vm1741 = vweird.f32 %v1735
        %vm1742 = vmor %vm1740, %vm1741
        %v1743 = vsel %vm1742, %v1735, %v1739
        %v1744 = vand.u32 2147483647, %v1734
        %vm1745 = vcmp.eq.f32.partialorder %v1744, 8.507059e+37
        %v1746 = vand.u32 %v1734, 2147483648
        %v1747 = vor.u32 1.1754944e-38, %v1746
        %v1748 = vsel %vm1745, %v1747, %v1743
        %v1749 = vmul.f32 %v1687, %v1713
        %v1750 = vmul.f32 %v1688, %v1727
        %v1751 = vmul.f32 %v1687, %v1748
        %v1752 = vmul.f32 %v1688, %v1748
        %vm1753 = vcmp.gt.f32.partialorder %v1687, 0.0
        %vm1754 = vcmp.gt.f32.partialorder %v1688, 0.0
        %v1755 = vsel %vm1753, 1, 0
        %v1756 = vsel %vm1754, 1, 0
        %v1757 = vcvt.s32.f32 %v1755
        %v1758 = vcvt.s32.f32 %v1756
        %1761 = vrot.lane.b32.xlu0 %v1690, 8
        %v1762 = vpop.permute.xlu0 %1761
        %1763 = vrot.lane.b32.xlu0 %v1691, 8
        %v1764 = vpop.permute.xlu0 %1763
        %v1767 = vsel %vm407, %v1749, %v1762
        %v1768 = vsel %vm407, %v1750, %v1764
        %1769 = vxpose.xlu0.b32.start [1/16] %v1751, 128
        %1770 = vxpose.xlu0.b32.cont [2/16] %v1752, 128
        %1771 = vxpose.xlu0.b32.cont [3/16] 0.0, 128
        %1772 = vxpose.xlu0.b32.cont [4/16] 0.0, 128
        %1773 = vxpose.xlu0.b32.cont [5/16] 0.0, 128
        %1774 = vxpose.xlu0.b32.cont [6/16] 0.0, 128
        %1775 = vxpose.xlu0.b32.cont [7/16] 0.0, 128
        %1776 = vxpose.xlu0.b32.cont [8/16] 0.0, 128
        %1777 = vxpose.xlu0.b32.cont [9/16] 0.0, 128
        %1778 = vxpose.xlu0.b32.cont [10/16] 0.0, 128
        %1779 = vxpose.xlu0.b32.cont [11/16] 0.0, 128
        %1780 = vxpose.xlu0.b32.cont [12/16] 0.0, 128
        %1781 = vxpose.xlu0.b32.cont [13/16] 0.0, 128
        %1782 = vxpose.xlu0.b32.cont [14/16] 0.0, 128
        %1783 = vxpose.xlu0.b32.cont [15/16] 0.0, 128
        %1784 = vxpose.xlu0.b32.end [16/16] 0.0, 128
        %v1785 = vpop.trf.xlu0
        %v1786 = vpop.trf.xlu0
        %v1787 = vpop.trf.xlu0
        %v1788 = vpop.trf.xlu0
        %v1789 = vpop.trf.xlu0
        %v1790 = vpop.trf.xlu0
        %v1791 = vpop.trf.xlu0
        %v1792 = vpop.trf.xlu0
        %v1793 = vpop.trf.xlu0
        %v1794 = vpop.trf.xlu0
        %v1795 = vpop.trf.xlu0
        %v1796 = vpop.trf.xlu0
        %v1797 = vpop.trf.xlu0
        %v1798 = vpop.trf.xlu0
        %v1799 = vpop.trf.xlu0
        %v1800 = vpop.trf.xlu0
        %v1802 = vsel %vm515, %v1785, 0
        %1804 = vmatpush.msra.mxu0 0.0
        %1805 = vmatpush.msra.mxu0 0.0
        %1806 = vmatpush.msra.mxu0 0.0
        %1807 = vmatpush.msra.mxu0 0.0
        %1808 = vmatpush.msra.mxu0 0.0
        %1809 = vmatpush.msra.mxu0 0.0
        %1810 = vmatpush.msra.mxu0 0.0
        %1811 = vmatpush.msra.mxu0 0.0
        %1812 = vmatpush.msra.mxu0 0.0
        %1813 = vmatpush.msra.mxu0 0.0
        %1814 = vmatpush.msra.mxu0 0.0
        %1815 = vmatpush.msra.mxu0 0.0
        %1816 = vmatpush.msra.mxu0 0.0
        %1817 = vmatpush.msra.mxu0 0.0
        %1818 = vmatpush.msra.mxu0 %v1768
        %1819 = vmatpush.msra.mxu0 %v1767
        %1820 = vmatmul.f32.gmra.mxu0 %v1802
        %v1821 = vpop.f32.mrf.mxu0
        %v1822 = vadd.f32 0.0, %v1821
        %1823 = vdwg.mxu0
        %1824 = vxpose.xlu0.b32.start [1/16] %v1757, 128
        %1825 = vxpose.xlu0.b32.cont [2/16] %v1758, 128
        %1826 = vxpose.xlu0.b32.cont [3/16] 0.0, 128
        %1827 = vxpose.xlu0.b32.cont [4/16] 0.0, 128
        %1828 = vxpose.xlu0.b32.cont [5/16] 0.0, 128
        %1829 = vxpose.xlu0.b32.cont [6/16] 0.0, 128
        %1830 = vxpose.xlu0.b32.cont [7/16] 0.0, 128
        %1831 = vxpose.xlu0.b32.cont [8/16] 0.0, 128
        %1832 = vxpose.xlu0.b32.cont [9/16] 0.0, 128
        %1833 = vxpose.xlu0.b32.cont [10/16] 0.0, 128
        %1834 = vxpose.xlu0.b32.cont [11/16] 0.0, 128
        %1835 = vxpose.xlu0.b32.cont [12/16] 0.0, 128
        %1836 = vxpose.xlu0.b32.cont [13/16] 0.0, 128
        %1837 = vxpose.xlu0.b32.cont [14/16] 0.0, 128
        %1838 = vxpose.xlu0.b32.cont [15/16] 0.0, 128
        %1839 = vxpose.xlu0.b32.end [16/16] 0.0, 128
        %v1840 = vpop.trf.xlu0
        %v1841 = vpop.trf.xlu0
        %v1842 = vpop.trf.xlu0
        %v1843 = vpop.trf.xlu0
        %v1844 = vpop.trf.xlu0
        %v1845 = vpop.trf.xlu0
        %v1846 = vpop.trf.xlu0
        %v1847 = vpop.trf.xlu0
        %v1848 = vpop.trf.xlu0
        %v1849 = vpop.trf.xlu0
        %v1850 = vpop.trf.xlu0
        %v1851 = vpop.trf.xlu0
        %v1852 = vpop.trf.xlu0
        %v1853 = vpop.trf.xlu0
        %v1854 = vpop.trf.xlu0
        %v1855 = vpop.trf.xlu0
        %v1857 = vsel %vm515, %v1840, 0
        %1859 = vmatpush.msra.mxu0 0.0
        %1860 = vmatpush.msra.mxu0 0.0
        %1861 = vmatpush.msra.mxu0 0.0
        %1862 = vmatpush.msra.mxu0 0.0
        %1863 = vmatpush.msra.mxu0 0.0
        %1864 = vmatpush.msra.mxu0 0.0
        %1865 = vmatpush.msra.mxu0 0.0
        %1866 = vmatpush.msra.mxu0 0.0
        %1867 = vmatpush.msra.mxu0 0.0
        %1868 = vmatpush.msra.mxu0 0.0
        %1869 = vmatpush.msra.mxu0 0.0
        %1870 = vmatpush.msra.mxu0 0.0
        %1871 = vmatpush.msra.mxu0 0.0
        %1872 = vmatpush.msra.mxu0 0.0
        %1873 = vmatpush.msra.mxu0 %v1750
        %1874 = vmatpush.msra.mxu0 %v1749
        %1875 = vmatmul.f32.gmra.mxu0 %v1857
        %v1876 = vpop.f32.mrf.mxu0
        %v1877 = vadd.f32 0.0, %v1876
        %1878 = vdwg.mxu0
        %v1880 = vsel %vm594, %v1693, 0
        %1882 = vmatpush.msra.mxu0 0.0
        %1883 = vmatpush.msra.mxu0 0.0
        %1884 = vmatpush.msra.mxu0 0.0
        %1885 = vmatpush.msra.mxu0 0.0
        %1886 = vmatpush.msra.mxu0 0.0
        %1887 = vmatpush.msra.mxu0 0.0
        %1888 = vmatpush.msra.mxu0 0.0
        %1889 = vmatpush.msra.mxu0 0.0
        %1890 = vmatpush.msra.mxu0 0.0
        %1891 = vmatpush.msra.mxu0 0.0
        %1892 = vmatpush.msra.mxu0 0.0
        %1893 = vmatpush.msra.mxu0 0.0
        %1894 = vmatpush.msra.mxu0 %v385
        %1895 = vmatpush.msra.mxu0 %v383
        %1896 = vmatpush.msra.mxu0 %v381
        %1897 = vmatpush.msra.mxu0 %v379
        %1898 = vmatmul.f32.gmra.mxu0 %v1880
        %v1899 = vpop.f32.mrf.mxu0
        %v1900 = vadd.f32 0.0, %v1899
        %1901 = vdwg.mxu0
        %1902 = vmatpush.msra.mxu0 0.0
        %1903 = vmatpush.msra.mxu0 0.0
        %1904 = vmatpush.msra.mxu0 0.0
        %1905 = vmatpush.msra.mxu0 0.0
        %1906 = vmatpush.msra.mxu0 0.0
        %1907 = vmatpush.msra.mxu0 0.0
        %1908 = vmatpush.msra.mxu0 0.0
        %1909 = vmatpush.msra.mxu0 0.0
        %1910 = vmatpush.msra.mxu0 0.0
        %1911 = vmatpush.msra.mxu0 0.0
        %1912 = vmatpush.msra.mxu0 0.0
        %1913 = vmatpush.msra.mxu0 0.0
        %1914 = vmatpush.msra.mxu0 %v386
        %1915 = vmatpush.msra.mxu0 %v384
        %1916 = vmatpush.msra.mxu0 %v382
        %1917 = vmatpush.msra.mxu0 %v380
        %1918 = vmatmul.f32.gmra.mxu0 %v1880
        %v1919 = vpop.f32.mrf.mxu0
        %v1920 = vadd.f32 0.0, %v1919
        %1921 = vdwg.mxu0
        %1923 = vrot.lane.b32.xlu0 %v1822, 120
        %v1924 = vpop.permute.xlu0 %1923
        %1928 = vrot.lane.b32.xlu0 %v1900, 96
        %v1929 = vpop.permute.xlu0 %1928
        %1930 = vrot.lane.b32.xlu0 %v1920, 96
        %v1931 = vpop.permute.xlu0 %1930
        %v1932 = vsel %vm648, %v1929, %v1931
        %v1935 = vsel %vm594, %v1924, %v1932
        %v1936 = vsel %vm407, %v1822, 0
        %1938 = vmatpush.msra.mxu0 0.0
        %1939 = vmatpush.msra.mxu0 0.0
        %1940 = vmatpush.msra.mxu0 0.0
        %1941 = vmatpush.msra.mxu0 0.0
        %1942 = vmatpush.msra.mxu0 0.0
        %1943 = vmatpush.msra.mxu0 0.0
        %1944 = vmatpush.msra.mxu0 0.0
        %1945 = vmatpush.msra.mxu0 0.0
        %1946 = vmatpush.msra.mxu0 0.0
        %1947 = vmatpush.msra.mxu0 0.0
        %1948 = vmatpush.msra.mxu0 0.0
        %1949 = vmatpush.msra.mxu0 0.0
        %1950 = vmatpush.msra.mxu0 0.0
        %1951 = vmatpush.msra.mxu0 0.0
        %1952 = vmatpush.msra.mxu0 0.0
        %1953 = vmatpush.msra.mxu0 %v1935
        %1954 = vmatmul.f32.gmra.mxu0 %v1936
        %v1955 = vpop.f32.mrf.mxu0
        %v1956 = vadd.f32 0.0, %v1955
        %1957 = vdwg.mxu0
        %1958 = vmatpush.msra.mxu0 0.0
        %1959 = vmatpush.msra.mxu0 0.0
        %1960 = vmatpush.msra.mxu0 0.0
        %1961 = vmatpush.msra.mxu0 0.0
        %1962 = vmatpush.msra.mxu0 0.0
        %1963 = vmatpush.msra.mxu0 0.0
        %1964 = vmatpush.msra.mxu0 0.0
        %1965 = vmatpush.msra.mxu0 0.0
        %1966 = vmatpush.msra.mxu0 0.0
        %1967 = vmatpush.msra.mxu0 0.0
        %1968 = vmatpush.msra.mxu0 0.0
        %1969 = vmatpush.msra.mxu0 0.0
        %1970 = vmatpush.msra.mxu0 0.0
        %1971 = vmatpush.msra.mxu0 0.0
        %1972 = vmatpush.msra.mxu0 0.0
        %1973 = vmatpush.msra.mxu0 %v1931
        %1974 = vmatmul.f32.gmra.mxu0 %v1936
        %v1975 = vpop.f32.mrf.mxu0
        %v1976 = vadd.f32 0.0, %v1975
        %1977 = vdwg.mxu0
        %v1979 = vsel %vm594, %v1956, 0
        %1981 = vmatpush.msra.mxu0 0.0
        %1982 = vmatpush.msra.mxu0 0.0
        %1983 = vmatpush.msra.mxu0 0.0
        %1984 = vmatpush.msra.mxu0 0.0
        %1985 = vmatpush.msra.mxu0 0.0
        %1986 = vmatpush.msra.mxu0 0.0
        %1987 = vmatpush.msra.mxu0 0.0
        %1988 = vmatpush.msra.mxu0 0.0
        %1989 = vmatpush.msra.mxu0 0.0
        %1990 = vmatpush.msra.mxu0 0.0
        %1991 = vmatpush.msra.mxu0 0.0
        %1992 = vmatpush.msra.mxu0 0.0
        %1993 = vmatpush.msra.mxu0 %v390
        %1994 = vmatpush.msra.mxu0 %v389
        %1995 = vmatpush.msra.mxu0 %v388
        %1996 = vmatpush.msra.mxu0 %v387
        %1997 = vmatmul.f32.gmra.mxu0 %v1979
        %v1998 = vpop.f32.mrf.mxu0
        %v1999 = vadd.f32 0.0, %v1998
        %2000 = vdwg.mxu0
        %2001 = vrot.lane.b32.xlu0 %v1956, 96
        %v2002 = vpop.permute.xlu0 %2001
        %v2005 = vsel %vm407, %v1877, 0
        %2007 = vmatpush.msra.mxu0 0.0
        %2008 = vmatpush.msra.mxu0 0.0
        %2009 = vmatpush.msra.mxu0 0.0
        %2010 = vmatpush.msra.mxu0 0.0
        %2011 = vmatpush.msra.mxu0 0.0
        %2012 = vmatpush.msra.mxu0 0.0
        %2013 = vmatpush.msra.mxu0 0.0
        %2014 = vmatpush.msra.mxu0 0.0
        %2015 = vmatpush.msra.mxu0 0.0
        %2016 = vmatpush.msra.mxu0 0.0
        %2017 = vmatpush.msra.mxu0 0.0
        %2018 = vmatpush.msra.mxu0 0.0
        %2019 = vmatpush.msra.mxu0 0.0
        %2020 = vmatpush.msra.mxu0 0.0
        %2021 = vmatpush.msra.mxu0 0.0
        %2022 = vmatpush.msra.mxu0 %v2002
        %2023 = vmatmul.f32.gmra.mxu0 %v2005
        %v2024 = vpop.f32.mrf.mxu0
        %v2025 = vadd.f32 0.0, %v2024
        %2026 = vdwg.mxu0
        %v2027 = vsel %vm407, %v1749, 0.0
        %v2028 = vsel %vm407, %v1750, 0.0
        %v2029 = vadd.f32 %v2027, %v2028
        %v2030 = vrot.slane %v2029, 4
        %v2031 = vadd.f32 %v2029, %v2030
        %v2032 = vrot.slane %v2031, 2
        %v2033 = vadd.f32 %v2031, %v2032
        %v2034 = vrot.slane %v2033, 1
        %v2035 = vadd.f32 %v2033, %v2034
        %2037 = vrot.lane.b32.xlu0 %v1956, 32
        %v2038 = vpop.permute.xlu0 %2037
        %2039 = vrot.lane.b32.xlu0 %v1976, 32
        %v2040 = vpop.permute.xlu0 %2039
        %v2041 = vsel %vm594, %v2038, %v2040
        %v2044 = vsel %vm407, %v2035, 0
        %2046 = vmatpush.msra.mxu0 0.0
        %2047 = vmatpush.msra.mxu0 0.0
        %2048 = vmatpush.msra.mxu0 0.0
        %2049 = vmatpush.msra.mxu0 0.0
        %2050 = vmatpush.msra.mxu0 0.0
        %2051 = vmatpush.msra.mxu0 0.0
        %2052 = vmatpush.msra.mxu0 0.0
        %2053 = vmatpush.msra.mxu0 0.0
        %2054 = vmatpush.msra.mxu0 0.0
        %2055 = vmatpush.msra.mxu0 0.0
        %2056 = vmatpush.msra.mxu0 0.0
        %2057 = vmatpush.msra.mxu0 0.0
        %2058 = vmatpush.msra.mxu0 0.0
        %2059 = vmatpush.msra.mxu0 0.0
        %2060 = vmatpush.msra.mxu0 0.0
        %2061 = vmatpush.msra.mxu0 %v2041
        %2062 = vmatmul.f32.gmra.mxu0 %v2044
        %v2063 = vpop.f32.mrf.mxu0
        %v2064 = vadd.f32 0.0, %v2063
        %2065 = vdwg.mxu0
        %v2066 = vsel %vm783, %v1999, 0.0
        %v2067 = vrot.slane %v2066, 4
        %v2068 = vadd.f32 %v2066, %v2067
        %v2069 = vrot.slane %v2068, 2
        %v2070 = vadd.f32 %v2068, %v2069
        %v2071 = vrot.slane %v2070, 1
        %v2072 = vadd.f32 %v2070, %v2071
        %v2073 = vadd.f32 %v1900, %v1999
        %v2074 = vadd.f32 %v2073, %v2025
        %v2075 = vperm.slane %v2064, 0
        %v2076 = vadd.f32 %v2074, %v2075
        %2078 = vrot.lane.b32.xlu0 %v2072, 64
        %v2079 = vpop.permute.xlu0 %2078
        %v2081 = vadd.f32 %v2076, %v2079
        %v2082 = vadd.f32 %v2081, %v800
        %v2083 = vmax.f32 %v2082, 0.0
        %v2085 = vsel %vm804, %v2083, 0
        %2087 = vmatpush.msra.mxu0 0.0
        %2088 = vmatpush.msra.mxu0 0.0
        %2089 = vmatpush.msra.mxu0 0.0
        %2090 = vmatpush.msra.mxu0 0.0
        %2091 = vmatpush.msra.mxu0 0.0
        %2092 = vmatpush.msra.mxu0 0.0
        %2093 = vmatpush.msra.mxu0 0.0
        %2094 = vmatpush.msra.mxu0 0.0
        %2095 = vmatpush.msra.mxu0 %v398
        %2096 = vmatpush.msra.mxu0 %v397
        %2097 = vmatpush.msra.mxu0 %v396
        %2098 = vmatpush.msra.mxu0 %v395
        %2099 = vmatpush.msra.mxu0 %v394
        %2100 = vmatpush.msra.mxu0 %v393
        %2101 = vmatpush.msra.mxu0 %v392
        %2102 = vmatpush.msra.mxu0 %v391
        %2103 = vmatmul.f32.gmra.mxu0 %v2085
        %v2104 = vpop.f32.mrf.mxu0
        %v2105 = vadd.f32 %v803, %v2104
        %2106 = vdwg.mxu0
        %v2107 = vmax.f32 %v2105, 0.0
        %v2108 = vmul.f32 %v2107, %v829
        %v2109 = vsel %vm804, %v2108, 0.0
        %2110 = vadd.xlane.f32.xlu0 %v2109
        %v2111 = vpop.xlane.xlu0 %2110
        %v2113 = vlaneseq
        %v2114 = vand.u32 %v2113, 127
        %v2115 = vperm.slane %v833, %v2114
        %v2118 = vperm.slane %v1259, %v2114
        %v2121 = vperm.slane %v1685, %v2114
        %v2124 = vperm.slane %v2111, %v2114
        %vm2126 = vcmask 1040384
        %v2127 = vsel %vm2126, %v2115, %v2118
        %vm2128 = vcmask 1041408
        %v2129 = vsel %vm2128, %v2127, %v2121
        %vm2130 = vcmask 1042432
        %v2131 = vsel %vm2130, %v2129, %v2124
        %vm2132 = vcmask 60416
        %2133 = vst.msk [vmem:[%s358] sm:$0xf] %vm2132, %v2131
        %s2134 = sand.u32 %s193, 1
        %s2135 = scalar_lea.sflag [#allocation4], %s2134
        %s2136 = sand.u32 %s193, 1
        %s2137 = smul.addr %s2136, 4
        %s2138 = scalar_lea.vmem [#allocation8], %s2137
        // Predicated region
        $region61: #{tpu_custom_call.1} parent=47 // pred_check
          %p2139 = pneg %p203
        $region62: #{tpu_custom_call.1} parent=47 // pred_check_branch
          %2141 = sbr.rel (%p2139) target = $region64
        $region63: #{tpu_custom_call.1} parent=47 // pred_region
          %2143 = vsyncadd %s2135, 0
          %s2144 = smul.addr %s23, 4
          %s2145 = scalar_lea.hbm %s7, %s2144
          %s2147 = sshll.u32 %s2138, 4
          %s2148 = int_to_ptr.vmem [resolvable:$true] %s2147
          %s2149 = sshll.u32 %s2145, 4
          %s2150 = int_to_ptr.hbm [resolvable:$true] %s2149
          %2152 = dma.vmem_to_hbm [thread:$0]  %s2148, 64, %s2150, %s2135
        $region64: #{tpu_custom_call.1} parent=47 // pred_fallthru
          _
      $region48: #{tpu_custom_call.1} parent=5 // pred_fallthru
        _
      %p2153 = scmp.le.s32.totalorder 2, %s18
      // Predicated region
      $region65: #{tpu_custom_call.1} parent=5 // pred_check
        %p2154 = pneg %p2153
      $region66: #{tpu_custom_call.1} parent=5 // pred_check_branch
        %2156 = sbr.rel (%p2154) target = $region68
      $region67: #{tpu_custom_call.1} parent=5 // pred_region
        %s2157 = ssub.s32 %s18, 2
        // Predicated region
        $region69: #{tpu_custom_call.1} parent=67 // pred_check
          %p2158 = pneg %p209
        $region70: #{tpu_custom_call.1} parent=67 // pred_check_branch
          %2160 = sbr.rel (%p2158) target = $region72
        $region71: #{tpu_custom_call.1} parent=67 // pred_region
          %s2161 = sand.u32 %s194, 1
          %s2162 = scalar_lea.sflag [#allocation4], %s2161
          %s2163 = sand.u32 %s194, 1
          %s2164 = smul.addr %s2163, 4
          %s2165 = scalar_lea.vmem [#allocation8], %s2164
          %2167 = dma.done %s2162, 64
        $region72: #{tpu_custom_call.1} parent=67 // pred_fallthru
          _
      $region68: #{tpu_custom_call.1} parent=5 // pred_fallthru
        _
    $region6: #{tpu_custom_call.1} parent=1 // loop_footer
      %s22 = sadd.s32 1, %s18
    $region7: #{tpu_custom_call.1} parent=1 // loop_footer_branch
      %17 = sbr.rel target = $region3
    $region8: #{tpu_custom_call.1} parent=1 // loop_exit
      _
    %2168 = vsyncpa [#allocation3], 1
    %s2169 = scalar_lea.sflag [#allocation3], 1
    %2170 = vsyncpa %s2169, 1
    %2171 = vsyncpa [#allocation6], 1
    %2172 = vsyncpa [#allocation4], 1
    %s2173 = scalar_lea.sflag [#allocation4], 1
    %2174 = vsyncpa %s2173, 1

</llo_original>
